<compile_context>
chip_gen: v6e
topology: v6e:2x2x1
jax: 0.10.0
libtpu: 0.0.40
codegen_flags: <defaults>
</compile_context>

<pallas_src>
import functools

import jax
import jax.numpy as jnp
from jax.experimental import pallas as pl
from jax.experimental.pallas import tpu as pltpu


# ----------------------------------------------------------------------------
# Fused Pallas kernel: encoder branch + rand_idx select + head MLP
# ----------------------------------------------------------------------------
def tcn_moco_fused_kernel(n_levels, ksize, hidden, idx_ref, x_ref, mask_ref,
                          emb_w_ref, emb_b_ref, conv_w_ref, conv_b_ref,
                          tfd_w_ref, tfd_b_ref, w1_ref, b1_ref, w2_ref, b2_ref,
                          enc_ref, head_ref):
    """One encoder branch + its head; refs are branch-squeezed (grid axis 0)."""
    B, L, Din = x_ref.shape
    HP = emb_w_ref.shape[1]
    KH = conv_w_ref.shape[1]            # ksize*hidden rounded up to a lane tile

    # nan_mask = ~x.isnan().any(-1); x[~nan_mask] = 0
    x = x_ref[...]
    isnan_f = jnp.where(x != x, 1.0, 0.0)
    row_ok = jnp.max(isnan_f, axis=-1, keepdims=True) < 0.5            # (B,L,1)
    x = jnp.where(row_ok, x, 0.0)

    # enc_embedding (nn.Linear); bf16 MXU inputs, f32 accumulation. Padded
    # weight columns/bias lanes are zero, so padded lanes stay 0 downstream.
    emb = (jnp.dot(x.astype(jnp.bfloat16).reshape(B * L, Din), emb_w_ref[...],
                   preferred_element_type=jnp.float32)
           + emb_b_ref[...]).reshape(B, L, HP)

    # mask &= nan_mask ; enc_embed[~mask] = 0
    keep = jnp.logical_and(mask_ref[...] > 0.5, row_ok)
    h = jnp.where(keep, emb, 0.0)

    # TemporalConvNet: (e_layer+1) TemporalBlocks, dilation 2**lvl, equal width.
    # Each causal dilated conv (Conv1d + Chomp1d) = ONE matmul over a
    # tap-stacked input built in-register: tap j holds h[:, t-shift_j, :hidden]
    # (zeros where t < shift_j). Contraction depth = ksize*hidden (-> KH=128).
    # TODO(synk): TemporalBlock dropout omitted (eval-mode identity).
    # TODO(synk): weight_norm is a reparametrization; fold it into conv_w when
    #             porting real checkpoints.
    for lvl in range(n_levels):
        dil = 2 ** lvl
        res = h
        for ci in range(2):
            h32 = h[:, :, :hidden]                                     # (B,L,hid)
            taps = []
            for j in range(ksize):
                shift = (ksize - 1 - j) * dil
                if shift == 0:
                    taps.append(h32)
                elif shift < L:
                    taps.append(jnp.concatenate(
                        [jnp.zeros((B, shift, hidden), jnp.float32),
                         h32[:, :L - shift, :]], axis=1))
                else:           # tap only ever sees the causal zero padding
                    taps.append(jnp.zeros((B, L, hidden), jnp.float32))
            if KH > ksize * hidden:                                    # lane pad
                taps.append(jnp.zeros((B, L, KH - ksize * hidden), jnp.float32))
            xcat = jnp.concatenate(taps, axis=-1).astype(jnp.bfloat16)  # (B,L,KH)
            li = lvl * 2 + ci
            h = (jnp.dot(xcat.reshape(B * L, KH), conv_w_ref[li],
                         preferred_element_type=jnp.float32)
                 + conv_b_ref[li]).reshape(B, L, HP)
            h = jnp.maximum(h, 0.0)
        h = jnp.maximum(h + res, 0.0)    # residual (widths equal: no downsample)

    # tfd (nn.Linear, mare=False) -> encoder output
    enc_ref[...] = (jnp.dot(h.reshape(B * L, HP).astype(jnp.bfloat16),
                            tfd_w_ref[...], preferred_element_type=jnp.float32)
                    + tfd_b_ref[...]).reshape(B, L, HP)

    # Fused head: enc_out[:, rand_idx] via a dynamic-slice load (no one-hot,
    # no second kernel), then Linear-ReLU-Linear with this branch's weights.
    idx = idx_ref[0]
    sel = enc_ref[:, pl.ds(idx, 1), :].reshape(B, HP)
    h1 = jnp.maximum(
        jnp.dot(sel.astype(jnp.bfloat16), w1_ref[...],
                preferred_element_type=jnp.float32) + b1_ref[...], 0.0)
    head_ref[...] = (jnp.dot(h1.astype(jnp.bfloat16), w2_ref[...],
                             preferred_element_type=jnp.float32) + b2_ref[...])


# ----------------------------------------------------------------------------
# Wrapper (glue)
# ----------------------------------------------------------------------------
def run_fused(x2, mask2, p2, hp2, rand_idx, n_levels, ksize, hidden):
    """Both branches (query/key stacked on axis 0) + heads in one pallas_call."""
    BR, B, L, Din = x2.shape
    HP = p2["emb_w"].shape[-1]
    nl2, KH, _ = p2["conv_w"].shape[1:]
    kern = functools.partial(tcn_moco_fused_kernel, n_levels, ksize, hidden)
    b4 = lambda b, idx: (b, 0, 0, 0)    # index maps get the prefetch ref last
    b3 = lambda b, idx: (b, 0, 0)
    grid_spec = pltpu.PrefetchScalarGridSpec(
        num_scalar_prefetch=1,
        grid=(BR,),
        in_specs=[
            pl.BlockSpec((None, B, L, Din), b4),       # x
            pl.BlockSpec((None, B, L, 1), b4),         # binomial mask
            pl.BlockSpec((None, Din, HP), b3),         # emb_w
            pl.BlockSpec((None, 1, HP), b3),           # emb_b
            pl.BlockSpec((None, nl2, KH, HP), b4),     # conv_w (tap-stacked)
            pl.BlockSpec((None, nl2, 1, HP), b4),      # conv_b
            pl.BlockSpec((None, HP, HP), b3),          # tfd_w
            pl.BlockSpec((None, 1, HP), b3),           # tfd_b
            pl.BlockSpec((None, HP, HP), b3),          # head w1
            pl.BlockSpec((None, 1, HP), b3),           # head b1
            pl.BlockSpec((None, HP, HP), b3),          # head w2
            pl.BlockSpec((None, 1, HP), b3),           # head b2
        ],
        out_specs=(
            pl.BlockSpec((None, B, L, HP), b4),        # encoder output
            pl.BlockSpec((None, B, HP), b3),           # head output (q_t / k_t)
        ),
    )
    enc2, head2 = pl.pallas_call(
        kern,
        out_shape=(jax.ShapeDtypeStruct((BR, B, L, HP), jnp.float32),
                   jax.ShapeDtypeStruct((BR, B, HP), jnp.float32)),
        grid_spec=grid_spec,
        compiler_params=pltpu.CompilerParams(
            dimension_semantics=("parallel",),         # v7x: branch per TC
            vmem_limit_bytes=32 * 1024 * 1024),
    )(rand_idx, x2, mask2,
      p2["emb_w"].astype(jnp.bfloat16), p2["emb_b"],
      p2["conv_w"].astype(jnp.bfloat16), p2["conv_b"],
      p2["tfd_w"].astype(jnp.bfloat16), p2["tfd_b"],
      hp2["w1"].astype(jnp.bfloat16), hp2["b1"],
      hp2["w2"].astype(jnp.bfloat16), hp2["b2"])
    return enc2, head2


def tcn_moco_pretrain_forward(x_q, x_k, enc_q, enc_k, head_q, head_k, queue,
                              mask_q, mask_k, rand_idx, *, n_levels, ksize,
                              hidden, T, m, moco_cl_weight):
    # momentum update of the key encoder / key head (torch no_grad glue)
    ema = lambda pk, pq: pk * m + pq * (1.0 - m)
    enc_k = jax.tree_util.tree_map(ema, enc_k, enc_q)
    head_k = jax.tree_util.tree_map(ema, head_k, head_q)

    # stack query/key branches on a leading axis -> one fused pallas_call
    x2 = jnp.stack([x_q, x_k], axis=0)
    mask2 = jnp.stack([mask_q, mask_k], axis=0)
    p2 = jax.tree_util.tree_map(lambda a, b: jnp.stack([a, b], 0), enc_q, enc_k)
    hp2 = jax.tree_util.tree_map(lambda a, b: jnp.stack([a, b], 0), head_q, head_k)
    enc2, head2 = run_fused(x2, mask2, p2, hp2, rand_idx, n_levels, ksize, hidden)

    q_t = head2[0, :, :hidden]                                   # (B, hidden)
    k_t = head2[1, :, :hidden]

    # MoCo InfoNCE (l2norm=False), label 0, mean over batch -- tiny, plain JAX
    l_pos = jnp.sum(q_t * k_t, axis=-1, keepdims=True)           # (B, 1)
    l_neg = q_t @ queue                                          # (B, K)
    logits = jnp.concatenate([l_pos, l_neg], axis=1) / T
    cl_loss = jnp.mean(jax.nn.logsumexp(logits, axis=-1) - logits[:, 0])
    cl_loss = cl_loss * moco_cl_weight

    # _dequeue_and_enqueue: buffer mutation -> new array (queue_ptr starts at 0)
    new_queue = jax.lax.dynamic_update_slice(queue, k_t.T, (0, 0))

    enc_out = enc2[0, :, :, :hidden]     # query-branch encoder output (unpadded)
    return None, enc_out, cl_loss, new_queue


# ----------------------------------------------------------------------------
# Deterministic parameter init (synthetic; shapes follow the module __init__,
# stored lane-padded to HP, conv weights tap-stacked for the fat MXU matmul)
# ----------------------------------------------------------------------------
def _round_up(n, m):
    return ((n + m - 1) // m) * m


def init_encoder_params(key, input_size, hidden, hp, n_levels, ksize, scale=0.05):
    kh = _round_up(ksize * hidden, 128)
    ks = jax.random.split(key, 6)
    emb_w = jnp.pad(scale * jax.random.normal(ks[0], (input_size, hidden), jnp.float32),
                    ((0, 0), (0, hp - hidden)))
    emb_b = jnp.pad(scale * jax.random.normal(ks[1], (1, hidden), jnp.float32),
                    ((0, 0), (0, hp - hidden)))
    conv = scale * jax.random.normal(ks[2], (n_levels, 2, ksize, hidden, hidden),
                                     jnp.float32)
    conv_w = conv.reshape(n_levels * 2, ksize * hidden, hidden)     # tap-stacked
    conv_w = jnp.pad(conv_w, ((0, 0), (0, kh - ksize * hidden), (0, hp - hidden)))
    conv_b = scale * jax.random.normal(ks[3], (n_levels * 2, 1, hidden), jnp.float32)
    conv_b = jnp.pad(conv_b, ((0, 0), (0, 0), (0, hp - hidden)))
    tfd_w = jnp.pad(scale * jax.random.normal(ks[4], (hidden, hidden), jnp.float32),
                    ((0, hp - hidden), (0, hp - hidden)))
    tfd_b = jnp.pad(scale * jax.random.normal(ks[5], (1, hidden), jnp.float32),
                    ((0, 0), (0, hp - hidden)))
    return {"emb_w": emb_w, "emb_b": emb_b, "conv_w": conv_w, "conv_b": conv_b,
            "tfd_w": tfd_w, "tfd_b": tfd_b}


def init_head_params(key, hidden, hp, scale=0.05):
    ks = jax.random.split(key, 4)
    pad_w = lambda a: jnp.pad(a, ((0, hp - hidden), (0, hp - hidden)))
    pad_b = lambda a: jnp.pad(a, ((0, 0), (0, hp - hidden)))
    return {
        "w1": pad_w(scale * jax.random.normal(ks[0], (hidden, hidden), jnp.float32)),
        "b1": pad_b(scale * jax.random.normal(ks[1], (1, hidden), jnp.float32)),
        "w2": pad_w(scale * jax.random.normal(ks[2], (hidden, hidden), jnp.float32)),
        "b2": pad_b(scale * jax.random.normal(ks[3], (1, hidden), jnp.float32)),
    }


# ----------------------------------------------------------------------------
# Main
# ----------------------------------------------------------------------------
if __name__ == "__main__":
    # Small shapes: batch=2, seq=8, input_size=4, hidden=represent=32 (lane-
    # padded to 128), e_layer=2 (-> 3 TCN levels), kernel_size=3, queue K=8
    # (K % B == 0), T=1.0, m=0.999, moco_cl_weight=1.0.
    B, L = 2, 8
    input_size = 4
    hidden = 32
    HP = 128
    e_layer = 2
    ksize = 3
    K = 8
    T = 1.0
    m = 0.999
    mask_rate = 0.5
    moco_cl_weight = 1.0
    n_levels = e_layer + 1

    root = jax.random.PRNGKey(0)
    kx, kxk, kpe, kph, kq, kmq, kmk, kidx = jax.random.split(root, 8)

    x_q = jax.random.normal(kx, (B, L, input_size), jnp.float32)
    x_q = x_q.at[0, 1, 2].set(jnp.nan)   # exercise the NaN-row zeroing path
    x_k = jax.random.normal(kxk, (B, L, input_size), jnp.float32)

    enc_q_params = init_encoder_params(kpe, input_size, hidden, HP, n_levels, ksize)
    head_q_params = init_head_params(kph, hidden, HP)
    # encoder_k / head_k are deep copies of the query networks
    enc_k_params = jax.tree_util.tree_map(lambda a: a, enc_q_params)
    head_k_params = jax.tree_util.tree_map(lambda a: a, head_q_params)

    # register_buffer('queue', F.normalize(randn(hidden, K), dim=0))
    queue = jax.random.normal(kq, (hidden, K), jnp.float32)
    queue = queue / jnp.linalg.norm(queue, axis=0, keepdims=True)

    # generate_binomial_mask (deterministic via JAX PRNG); np.random.randint idx
    mask_q = jax.random.bernoulli(kmq, p=mask_rate, shape=(B, L, 1)).astype(jnp.float32)
    mask_k = jax.random.bernoulli(kmk, p=mask_rate, shape=(B, L, 1)).astype(jnp.float32)
    rand_idx = jax.random.randint(kidx, (1,), 0, L, dtype=jnp.int32)

    fwd = jax.jit(tcn_moco_pretrain_forward,
                  static_argnames=("n_levels", "ksize", "hidden"))
    none_out, enc_out, cl_loss, new_queue = fwd(
        x_q, x_k, enc_q_params, enc_k_params, head_q_params, head_k_params,
        queue, mask_q, mask_k, rand_idx,
        n_levels=n_levels, ksize=ksize, hidden=hidden,
        T=T, m=m, moco_cl_weight=moco_cl_weight)
    jax.block_until_ready((enc_out, cl_loss, new_queue))

    assert none_out is None
    assert enc_out.shape == (B, L, hidden)
    assert new_queue.shape == (hidden, K)
    assert jnp.isfinite(enc_out).all()
    assert jnp.isfinite(cl_loss)
    assert jnp.isfinite(new_queue).all()
    print("KERNEL_OK")
</pallas_src>

<mosaic_0001>
module attributes {stable_mosaic.version = 11 : i64} {
  func.func @tcn_moco_fused_kernel(%arg0: i32, %arg1: memref<1xi32, #tpu.memory_space<smem>>, %arg2: memref<1x2x8x4xf32, #tpu.memory_space<vmem>>, %arg3: memref<1x2x8x1xf32, #tpu.memory_space<vmem>>, %arg4: memref<1x4x128xbf16, #tpu.memory_space<vmem>>, %arg5: memref<1x1x128xf32, #tpu.memory_space<vmem>>, %arg6: memref<1x6x128x128xbf16, #tpu.memory_space<vmem>>, %arg7: memref<1x6x1x128xf32, #tpu.memory_space<vmem>>, %arg8: memref<1x128x128xbf16, #tpu.memory_space<vmem>>, %arg9: memref<1x1x128xf32, #tpu.memory_space<vmem>>, %arg10: memref<1x128x128xbf16, #tpu.memory_space<vmem>>, %arg11: memref<1x1x128xf32, #tpu.memory_space<vmem>>, %arg12: memref<1x128x128xbf16, #tpu.memory_space<vmem>>, %arg13: memref<1x1x128xf32, #tpu.memory_space<vmem>>, %arg14: memref<1x2x8x128xf32, #tpu.memory_space<vmem>>, %arg15: memref<1x2x128xf32, #tpu.memory_space<vmem>>) attributes {dimension_semantics = [#tpu.dimension_semantics<parallel>], iteration_bounds = array<i64: 2>, scalar_prefetch = 1 : i64, scratch_operands = 0 : i64, tpu.core_type = #tpu.core_type<tc>, window_params = [{transform_indices = @transform_0, window_bounds = array<i64: 1, 2, 8, 4>}, {transform_indices = @transform_1, window_bounds = array<i64: 1, 2, 8, 1>}, {transform_indices = @transform_2, window_bounds = array<i64: 1, 4, 128>}, {transform_indices = @transform_3, window_bounds = array<i64: 1, 1, 128>}, {transform_indices = @transform_4, window_bounds = array<i64: 1, 6, 128, 128>}, {transform_indices = @transform_5, window_bounds = array<i64: 1, 6, 1, 128>}, {transform_indices = @transform_6, window_bounds = array<i64: 1, 128, 128>}, {transform_indices = @transform_7, window_bounds = array<i64: 1, 1, 128>}, {transform_indices = @transform_8, window_bounds = array<i64: 1, 128, 128>}, {transform_indices = @transform_9, window_bounds = array<i64: 1, 1, 128>}, {transform_indices = @transform_10, window_bounds = array<i64: 1, 128, 128>}, {transform_indices = @transform_11, window_bounds = array<i64: 1, 1, 128>}, {transform_indices = @transform_12, window_bounds = array<i64: 1, 2, 8, 128>}, {transform_indices = @transform_13, window_bounds = array<i64: 1, 2, 128>}]} {
    %c0 = arith.constant 0 : index
    %c0_0 = arith.constant 0 : index
    %c0_1 = arith.constant 0 : index
    %c0_2 = arith.constant 0 : index
    %0 = vector.load %arg2[%c0, %c0_0, %c0_1, %c0_2] : memref<1x2x8x4xf32, #tpu.memory_space<vmem>>, vector<1x2x8x4xf32>
    %1 = vector.shape_cast %0 : vector<1x2x8x4xf32> to vector<2x8x4xf32>
    %2 = arith.cmpf one, %1, %1 : vector<2x8x4xf32>
    %cst = arith.constant 1.000000e+00 : f32
    %cst_3 = arith.constant 0.000000e+00 : f32
    %3 = vector.broadcast %cst : f32 to vector<2x8x4xf32>
    %4 = vector.broadcast %cst_3 : f32 to vector<2x8x4xf32>
    %5 = arith.select %2, %3, %4 : vector<2x8x4xi1>, vector<2x8x4xf32>
    %cst_4 = arith.constant dense<0xFF800000> : vector<2x8xf32>
    %6 = vector.multi_reduction <maximumf>, %5, %cst_4 [2] : vector<2x8x4xf32> to vector<2x8xf32>
    %7 = vector.shape_cast %6 : vector<2x8xf32> to vector<2x8x1xf32>
    %cst_5 = arith.constant 5.000000e-01 : f32
    %8 = vector.broadcast %cst_5 : f32 to vector<2x8x1xf32>
    %9 = arith.cmpf olt, %7, %8 : vector<2x8x1xf32>
    %cst_6 = arith.constant 0.000000e+00 : f32
    %10 = vector.shape_cast %9 : vector<2x8x1xi1> to vector<2x8x1xi1>
    %11 = vector.broadcast %10 : vector<2x8x1xi1> to vector<2x8x4xi1>
    %12 = vector.broadcast %cst_6 : f32 to vector<2x8x4xf32>
    %13 = arith.select %11, %1, %12 : vector<2x8x4xi1>, vector<2x8x4xf32>
    %14 = arith.truncf %13 : vector<2x8x4xf32> to vector<2x8x4xbf16>
    %15 = vector.shape_cast %14 : vector<2x8x4xbf16> to vector<16x4xbf16>
    %c0_7 = arith.constant 0 : index
    %c0_8 = arith.constant 0 : index
    %c0_9 = arith.constant 0 : index
    %16 = vector.load %arg4[%c0_7, %c0_8, %c0_9] : memref<1x4x128xbf16, #tpu.memory_space<vmem>>, vector<1x4x128xbf16>
    %17 = vector.shape_cast %16 : vector<1x4x128xbf16> to vector<4x128xbf16>
    %cst_10 = arith.constant dense<0.000000e+00> : vector<16x128xf32>
    %18 = tpu.matmul %15, %17, %cst_10 {dimension_numbers = #tpu.dot_dimension_numbers<[1], [0], [0], [1], [0, 0, 1, 1], [], []>} : vector<16x4xbf16>, vector<4x128xbf16>, vector<16x128xf32> -> vector<16x128xf32>
    %c0_11 = arith.constant 0 : index
    %c0_12 = arith.constant 0 : index
    %c0_13 = arith.constant 0 : index
    %19 = vector.load %arg5[%c0_11, %c0_12, %c0_13] : memref<1x1x128xf32, #tpu.memory_space<vmem>>, vector<1x1x128xf32>
    %20 = vector.shape_cast %19 : vector<1x1x128xf32> to vector<1x128xf32>
    %21 = vector.broadcast %20 : vector<1x128xf32> to vector<16x128xf32>
    %22 = arith.addf %18, %21 : vector<16x128xf32>
    %23 = vector.shape_cast %22 : vector<16x128xf32> to vector<2x8x128xf32>
    %c0_14 = arith.constant 0 : index
    %c0_15 = arith.constant 0 : index
    %c0_16 = arith.constant 0 : index
    %c0_17 = arith.constant 0 : index
    %24 = vector.load %arg3[%c0_14, %c0_15, %c0_16, %c0_17] : memref<1x2x8x1xf32, #tpu.memory_space<vmem>>, vector<1x2x8x1xf32>
    %25 = vector.shape_cast %24 : vector<1x2x8x1xf32> to vector<2x8x1xf32>
    %cst_18 = arith.constant 5.000000e-01 : f32
    %26 = vector.broadcast %cst_18 : f32 to vector<2x8x1xf32>
    %27 = arith.cmpf ogt, %25, %26 : vector<2x8x1xf32>
    %28 = arith.andi %27, %9 : vector<2x8x1xi1>
    %cst_19 = arith.constant 0.000000e+00 : f32
    %29 = vector.shape_cast %28 : vector<2x8x1xi1> to vector<2x8x1xi1>
    %30 = vector.broadcast %29 : vector<2x8x1xi1> to vector<2x8x128xi1>
    %31 = vector.broadcast %cst_19 : f32 to vector<2x8x128xf32>
    %32 = arith.select %30, %23, %31 : vector<2x8x128xi1>, vector<2x8x128xf32>
    %33 = vector.extract_strided_slice %32 {offsets = [0, 0, 0], sizes = [2, 8, 32], strides = [1, 1, 1]} : vector<2x8x128xf32> to vector<2x8x32xf32>
    %cst_20 = arith.constant 0.000000e+00 : f32
    %34 = vector.broadcast %cst_20 : f32 to vector<2x2x32xf32>
    %35 = vector.extract_strided_slice %33 {offsets = [0, 0, 0], sizes = [2, 6, 32], strides = [1, 1, 1]} : vector<2x8x32xf32> to vector<2x6x32xf32>
    %36 = tpu.concatenate %34, %35 in 1 : vector<2x2x32xf32>, vector<2x6x32xf32> -> vector<2x8x32xf32>
    %cst_21 = arith.constant 0.000000e+00 : f32
    %37 = vector.broadcast %cst_21 : f32 to vector<2x1x32xf32>
    %38 = vector.extract_strided_slice %33 {offsets = [0, 0, 0], sizes = [2, 7, 32], strides = [1, 1, 1]} : vector<2x8x32xf32> to vector<2x7x32xf32>
    %39 = tpu.concatenate %37, %38 in 1 : vector<2x1x32xf32>, vector<2x7x32xf32> -> vector<2x8x32xf32>
    %cst_22 = arith.constant 0.000000e+00 : f32
    %40 = vector.broadcast %cst_22 : f32 to vector<2x8x32xf32>
    %41 = tpu.concatenate %36, %39, %33, %40 in 2 : vector<2x8x32xf32>, vector<2x8x32xf32>, vector<2x8x32xf32>, vector<2x8x32xf32> -> vector<2x8x128xf32>
    %42 = arith.truncf %41 : vector<2x8x128xf32> to vector<2x8x128xbf16>
    %43 = vector.shape_cast %42 : vector<2x8x128xbf16> to vector<16x128xbf16>
    %c0_23 = arith.constant 0 : index
    %c0_24 = arith.constant 0 : index
    %c0_25 = arith.constant 0 : index
    %c0_26 = arith.constant 0 : index
    %44 = vector.load %arg6[%c0_23, %c0_24, %c0_25, %c0_26] : memref<1x6x128x128xbf16, #tpu.memory_space<vmem>>, vector<1x1x128x128xbf16>
    %45 = vector.shape_cast %44 : vector<1x1x128x128xbf16> to vector<128x128xbf16>
    %cst_27 = arith.constant dense<0.000000e+00> : vector<16x128xf32>
    %46 = tpu.matmul %43, %45, %cst_27 {dimension_numbers = #tpu.dot_dimension_numbers<[1], [0], [0], [1], [0, 0, 1, 1], [], []>} : vector<16x128xbf16>, vector<128x128xbf16>, vector<16x128xf32> -> vector<16x128xf32>
    %c0_28 = arith.constant 0 : index
    %c0_29 = arith.constant 0 : index
    %c0_30 = arith.constant 0 : index
    %c0_31 = arith.constant 0 : index
    %47 = vector.load %arg7[%c0_28, %c0_29, %c0_30, %c0_31] : memref<1x6x1x128xf32, #tpu.memory_space<vmem>>, vector<1x1x1x128xf32>
    %48 = vector.shape_cast %47 : vector<1x1x1x128xf32> to vector<1x128xf32>
    %49 = vector.broadcast %48 : vector<1x128xf32> to vector<16x128xf32>
    %50 = arith.addf %46, %49 : vector<16x128xf32>
    %51 = vector.shape_cast %50 : vector<16x128xf32> to vector<2x8x128xf32>
    %cst_32 = arith.constant 0.000000e+00 : f32
    %52 = vector.broadcast %cst_32 : f32 to vector<2x8x128xf32>
    %53 = arith.maximumf %51, %52 : vector<2x8x128xf32>
    %54 = vector.extract_strided_slice %53 {offsets = [0, 0, 0], sizes = [2, 8, 32], strides = [1, 1, 1]} : vector<2x8x128xf32> to vector<2x8x32xf32>
    %cst_33 = arith.constant 0.000000e+00 : f32
    %55 = vector.broadcast %cst_33 : f32 to vector<2x2x32xf32>
    %56 = vector.extract_strided_slice %54 {offsets = [0, 0, 0], sizes = [2, 6, 32], strides = [1, 1, 1]} : vector<2x8x32xf32> to vector<2x6x32xf32>
    %57 = tpu.concatenate %55, %56 in 1 : vector<2x2x32xf32>, vector<2x6x32xf32> -> vector<2x8x32xf32>
    %cst_34 = arith.constant 0.000000e+00 : f32
    %58 = vector.broadcast %cst_34 : f32 to vector<2x1x32xf32>
    %59 = vector.extract_strided_slice %54 {offsets = [0, 0, 0], sizes = [2, 7, 32], strides = [1, 1, 1]} : vector<2x8x32xf32> to vector<2x7x32xf32>
    %60 = tpu.concatenate %58, %59 in 1 : vector<2x1x32xf32>, vector<2x7x32xf32> -> vector<2x8x32xf32>
    %cst_35 = arith.constant 0.000000e+00 : f32
    %61 = vector.broadcast %cst_35 : f32 to vector<2x8x32xf32>
    %62 = tpu.concatenate %57, %60, %54, %61 in 2 : vector<2x8x32xf32>, vector<2x8x32xf32>, vector<2x8x32xf32>, vector<2x8x32xf32> -> vector<2x8x128xf32>
    %63 = arith.truncf %62 : vector<2x8x128xf32> to vector<2x8x128xbf16>
    %64 = vector.shape_cast %63 : vector<2x8x128xbf16> to vector<16x128xbf16>
    %c0_36 = arith.constant 0 : index
    %c1 = arith.constant 1 : index
    %c0_37 = arith.constant 0 : index
    %c0_38 = arith.constant 0 : index
    %65 = vector.load %arg6[%c0_36, %c1, %c0_37, %c0_38] : memref<1x6x128x128xbf16, #tpu.memory_space<vmem>>, vector<1x1x128x128xbf16>
    %66 = vector.shape_cast %65 : vector<1x1x128x128xbf16> to vector<128x128xbf16>
    %cst_39 = arith.constant dense<0.000000e+00> : vector<16x128xf32>
    %67 = tpu.matmul %64, %66, %cst_39 {dimension_numbers = #tpu.dot_dimension_numbers<[1], [0], [0], [1], [0, 0, 1, 1], [], []>} : vector<16x128xbf16>, vector<128x128xbf16>, vector<16x128xf32> -> vector<16x128xf32>
    %c0_40 = arith.constant 0 : index
    %c1_41 = arith.constant 1 : index
    %c0_42 = arith.constant 0 : index
    %c0_43 = arith.constant 0 : index
    %68 = vector.load %arg7[%c0_40, %c1_41, %c0_42, %c0_43] : memref<1x6x1x128xf32, #tpu.memory_space<vmem>>, vector<1x1x1x128xf32>
    %69 = vector.shape_cast %68 : vector<1x1x1x128xf32> to vector<1x128xf32>
    %70 = vector.broadcast %69 : vector<1x128xf32> to vector<16x128xf32>
    %71 = arith.addf %67, %70 : vector<16x128xf32>
    %72 = vector.shape_cast %71 : vector<16x128xf32> to vector<2x8x128xf32>
    %cst_44 = arith.constant 0.000000e+00 : f32
    %73 = vector.broadcast %cst_44 : f32 to vector<2x8x128xf32>
    %74 = arith.maximumf %72, %73 : vector<2x8x128xf32>
    %75 = arith.addf %74, %32 : vector<2x8x128xf32>
    %cst_45 = arith.constant 0.000000e+00 : f32
    %76 = vector.broadcast %cst_45 : f32 to vector<2x8x128xf32>
    %77 = arith.maximumf %75, %76 : vector<2x8x128xf32>
    %78 = vector.extract_strided_slice %77 {offsets = [0, 0, 0], sizes = [2, 8, 32], strides = [1, 1, 1]} : vector<2x8x128xf32> to vector<2x8x32xf32>
    %cst_46 = arith.constant 0.000000e+00 : f32
    %79 = vector.broadcast %cst_46 : f32 to vector<2x4x32xf32>
    %80 = vector.extract_strided_slice %78 {offsets = [0, 0, 0], sizes = [2, 4, 32], strides = [1, 1, 1]} : vector<2x8x32xf32> to vector<2x4x32xf32>
    %81 = tpu.concatenate %79, %80 in 1 : vector<2x4x32xf32>, vector<2x4x32xf32> -> vector<2x8x32xf32>
    %cst_47 = arith.constant 0.000000e+00 : f32
    %82 = vector.broadcast %cst_47 : f32 to vector<2x2x32xf32>
    %83 = vector.extract_strided_slice %78 {offsets = [0, 0, 0], sizes = [2, 6, 32], strides = [1, 1, 1]} : vector<2x8x32xf32> to vector<2x6x32xf32>
    %84 = tpu.concatenate %82, %83 in 1 : vector<2x2x32xf32>, vector<2x6x32xf32> -> vector<2x8x32xf32>
    %cst_48 = arith.constant 0.000000e+00 : f32
    %85 = vector.broadcast %cst_48 : f32 to vector<2x8x32xf32>
    %86 = tpu.concatenate %81, %84, %78, %85 in 2 : vector<2x8x32xf32>, vector<2x8x32xf32>, vector<2x8x32xf32>, vector<2x8x32xf32> -> vector<2x8x128xf32>
    %87 = arith.truncf %86 : vector<2x8x128xf32> to vector<2x8x128xbf16>
    %88 = vector.shape_cast %87 : vector<2x8x128xbf16> to vector<16x128xbf16>
    %c0_49 = arith.constant 0 : index
    %c2 = arith.constant 2 : index
    %c0_50 = arith.constant 0 : index
    %c0_51 = arith.constant 0 : index
    %89 = vector.load %arg6[%c0_49, %c2, %c0_50, %c0_51] : memref<1x6x128x128xbf16, #tpu.memory_space<vmem>>, vector<1x1x128x128xbf16>
    %90 = vector.shape_cast %89 : vector<1x1x128x128xbf16> to vector<128x128xbf16>
    %cst_52 = arith.constant dense<0.000000e+00> : vector<16x128xf32>
    %91 = tpu.matmul %88, %90, %cst_52 {dimension_numbers = #tpu.dot_dimension_numbers<[1], [0], [0], [1], [0, 0, 1, 1], [], []>} : vector<16x128xbf16>, vector<128x128xbf16>, vector<16x128xf32> -> vector<16x128xf32>
    %c0_53 = arith.constant 0 : index
    %c2_54 = arith.constant 2 : index
    %c0_55 = arith.constant 0 : index
    %c0_56 = arith.constant 0 : index
    %92 = vector.load %arg7[%c0_53, %c2_54, %c0_55, %c0_56] : memref<1x6x1x128xf32, #tpu.memory_space<vmem>>, vector<1x1x1x128xf32>
    %93 = vector.shape_cast %92 : vector<1x1x1x128xf32> to vector<1x128xf32>
    %94 = vector.broadcast %93 : vector<1x128xf32> to vector<16x128xf32>
    %95 = arith.addf %91, %94 : vector<16x128xf32>
    %96 = vector.shape_cast %95 : vector<16x128xf32> to vector<2x8x128xf32>
    %cst_57 = arith.constant 0.000000e+00 : f32
    %97 = vector.broadcast %cst_57 : f32 to vector<2x8x128xf32>
    %98 = arith.maximumf %96, %97 : vector<2x8x128xf32>
    %99 = vector.extract_strided_slice %98 {offsets = [0, 0, 0], sizes = [2, 8, 32], strides = [1, 1, 1]} : vector<2x8x128xf32> to vector<2x8x32xf32>
    %cst_58 = arith.constant 0.000000e+00 : f32
    %100 = vector.broadcast %cst_58 : f32 to vector<2x4x32xf32>
    %101 = vector.extract_strided_slice %99 {offsets = [0, 0, 0], sizes = [2, 4, 32], strides = [1, 1, 1]} : vector<2x8x32xf32> to vector<2x4x32xf32>
    %102 = tpu.concatenate %100, %101 in 1 : vector<2x4x32xf32>, vector<2x4x32xf32> -> vector<2x8x32xf32>
    %cst_59 = arith.constant 0.000000e+00 : f32
    %103 = vector.broadcast %cst_59 : f32 to vector<2x2x32xf32>
    %104 = vector.extract_strided_slice %99 {offsets = [0, 0, 0], sizes = [2, 6, 32], strides = [1, 1, 1]} : vector<2x8x32xf32> to vector<2x6x32xf32>
    %105 = tpu.concatenate %103, %104 in 1 : vector<2x2x32xf32>, vector<2x6x32xf32> -> vector<2x8x32xf32>
    %cst_60 = arith.constant 0.000000e+00 : f32
    %106 = vector.broadcast %cst_60 : f32 to vector<2x8x32xf32>
    %107 = tpu.concatenate %102, %105, %99, %106 in 2 : vector<2x8x32xf32>, vector<2x8x32xf32>, vector<2x8x32xf32>, vector<2x8x32xf32> -> vector<2x8x128xf32>
    %108 = arith.truncf %107 : vector<2x8x128xf32> to vector<2x8x128xbf16>
    %109 = vector.shape_cast %108 : vector<2x8x128xbf16> to vector<16x128xbf16>
    %c0_61 = arith.constant 0 : index
    %c3 = arith.constant 3 : index
    %c0_62 = arith.constant 0 : index
    %c0_63 = arith.constant 0 : index
    %110 = vector.load %arg6[%c0_61, %c3, %c0_62, %c0_63] : memref<1x6x128x128xbf16, #tpu.memory_space<vmem>>, vector<1x1x128x128xbf16>
    %111 = vector.shape_cast %110 : vector<1x1x128x128xbf16> to vector<128x128xbf16>
    %cst_64 = arith.constant dense<0.000000e+00> : vector<16x128xf32>
    %112 = tpu.matmul %109, %111, %cst_64 {dimension_numbers = #tpu.dot_dimension_numbers<[1], [0], [0], [1], [0, 0, 1, 1], [], []>} : vector<16x128xbf16>, vector<128x128xbf16>, vector<16x128xf32> -> vector<16x128xf32>
    %c0_65 = arith.constant 0 : index
    %c3_66 = arith.constant 3 : index
    %c0_67 = arith.constant 0 : index
    %c0_68 = arith.constant 0 : index
    %113 = vector.load %arg7[%c0_65, %c3_66, %c0_67, %c0_68] : memref<1x6x1x128xf32, #tpu.memory_space<vmem>>, vector<1x1x1x128xf32>
    %114 = vector.shape_cast %113 : vector<1x1x1x128xf32> to vector<1x128xf32>
    %115 = vector.broadcast %114 : vector<1x128xf32> to vector<16x128xf32>
    %116 = arith.addf %112, %115 : vector<16x128xf32>
    %117 = vector.shape_cast %116 : vector<16x128xf32> to vector<2x8x128xf32>
    %cst_69 = arith.constant 0.000000e+00 : f32
    %118 = vector.broadcast %cst_69 : f32 to vector<2x8x128xf32>
    %119 = arith.maximumf %117, %118 : vector<2x8x128xf32>
    %120 = arith.addf %119, %77 : vector<2x8x128xf32>
    %cst_70 = arith.constant 0.000000e+00 : f32
    %121 = vector.broadcast %cst_70 : f32 to vector<2x8x128xf32>
    %122 = arith.maximumf %120, %121 : vector<2x8x128xf32>
    %123 = vector.extract_strided_slice %122 {offsets = [0, 0, 0], sizes = [2, 8, 32], strides = [1, 1, 1]} : vector<2x8x128xf32> to vector<2x8x32xf32>
    %cst_71 = arith.constant 0.000000e+00 : f32
    %124 = vector.broadcast %cst_71 : f32 to vector<2x8x32xf32>
    %cst_72 = arith.constant 0.000000e+00 : f32
    %125 = vector.broadcast %cst_72 : f32 to vector<2x4x32xf32>
    %126 = vector.extract_strided_slice %123 {offsets = [0, 0, 0], sizes = [2, 4, 32], strides = [1, 1, 1]} : vector<2x8x32xf32> to vector<2x4x32xf32>
    %127 = tpu.concatenate %125, %126 in 1 : vector<2x4x32xf32>, vector<2x4x32xf32> -> vector<2x8x32xf32>
    %cst_73 = arith.constant 0.000000e+00 : f32
    %128 = vector.broadcast %cst_73 : f32 to vector<2x8x32xf32>
    %129 = tpu.concatenate %124, %127, %123, %128 in 2 : vector<2x8x32xf32>, vector<2x8x32xf32>, vector<2x8x32xf32>, vector<2x8x32xf32> -> vector<2x8x128xf32>
    %130 = arith.truncf %129 : vector<2x8x128xf32> to vector<2x8x128xbf16>
    %131 = vector.shape_cast %130 : vector<2x8x128xbf16> to vector<16x128xbf16>
    %c0_74 = arith.constant 0 : index
    %c4 = arith.constant 4 : index
    %c0_75 = arith.constant 0 : index
    %c0_76 = arith.constant 0 : index
    %132 = vector.load %arg6[%c0_74, %c4, %c0_75, %c0_76] : memref<1x6x128x128xbf16, #tpu.memory_space<vmem>>, vector<1x1x128x128xbf16>
    %133 = vector.shape_cast %132 : vector<1x1x128x128xbf16> to vector<128x128xbf16>
    %cst_77 = arith.constant dense<0.000000e+00> : vector<16x128xf32>
    %134 = tpu.matmul %131, %133, %cst_77 {dimension_numbers = #tpu.dot_dimension_numbers<[1], [0], [0], [1], [0, 0, 1, 1], [], []>} : vector<16x128xbf16>, vector<128x128xbf16>, vector<16x128xf32> -> vector<16x128xf32>
    %c0_78 = arith.constant 0 : index
    %c4_79 = arith.constant 4 : index
    %c0_80 = arith.constant 0 : index
    %c0_81 = arith.constant 0 : index
    %135 = vector.load %arg7[%c0_78, %c4_79, %c0_80, %c0_81] : memref<1x6x1x128xf32, #tpu.memory_space<vmem>>, vector<1x1x1x128xf32>
    %136 = vector.shape_cast %135 : vector<1x1x1x128xf32> to vector<1x128xf32>
    %137 = vector.broadcast %136 : vector<1x128xf32> to vector<16x128xf32>
    %138 = arith.addf %134, %137 : vector<16x128xf32>
    %139 = vector.shape_cast %138 : vector<16x128xf32> to vector<2x8x128xf32>
    %cst_82 = arith.constant 0.000000e+00 : f32
    %140 = vector.broadcast %cst_82 : f32 to vector<2x8x128xf32>
    %141 = arith.maximumf %139, %140 : vector<2x8x128xf32>
    %142 = vector.extract_strided_slice %141 {offsets = [0, 0, 0], sizes = [2, 8, 32], strides = [1, 1, 1]} : vector<2x8x128xf32> to vector<2x8x32xf32>
    %cst_83 = arith.constant 0.000000e+00 : f32
    %143 = vector.broadcast %cst_83 : f32 to vector<2x8x32xf32>
    %cst_84 = arith.constant 0.000000e+00 : f32
    %144 = vector.broadcast %cst_84 : f32 to vector<2x4x32xf32>
    %145 = vector.extract_strided_slice %142 {offsets = [0, 0, 0], sizes = [2, 4, 32], strides = [1, 1, 1]} : vector<2x8x32xf32> to vector<2x4x32xf32>
    %146 = tpu.concatenate %144, %145 in 1 : vector<2x4x32xf32>, vector<2x4x32xf32> -> vector<2x8x32xf32>
    %cst_85 = arith.constant 0.000000e+00 : f32
    %147 = vector.broadcast %cst_85 : f32 to vector<2x8x32xf32>
    %148 = tpu.concatenate %143, %146, %142, %147 in 2 : vector<2x8x32xf32>, vector<2x8x32xf32>, vector<2x8x32xf32>, vector<2x8x32xf32> -> vector<2x8x128xf32>
    %149 = arith.truncf %148 : vector<2x8x128xf32> to vector<2x8x128xbf16>
    %150 = vector.shape_cast %149 : vector<2x8x128xbf16> to vector<16x128xbf16>
    %c0_86 = arith.constant 0 : index
    %c5 = arith.constant 5 : index
    %c0_87 = arith.constant 0 : index
    %c0_88 = arith.constant 0 : index
    %151 = vector.load %arg6[%c0_86, %c5, %c0_87, %c0_88] : memref<1x6x128x128xbf16, #tpu.memory_space<vmem>>, vector<1x1x128x128xbf16>
    %152 = vector.shape_cast %151 : vector<1x1x128x128xbf16> to vector<128x128xbf16>
    %cst_89 = arith.constant dense<0.000000e+00> : vector<16x128xf32>
    %153 = tpu.matmul %150, %152, %cst_89 {dimension_numbers = #tpu.dot_dimension_numbers<[1], [0], [0], [1], [0, 0, 1, 1], [], []>} : vector<16x128xbf16>, vector<128x128xbf16>, vector<16x128xf32> -> vector<16x128xf32>
    %c0_90 = arith.constant 0 : index
    %c5_91 = arith.constant 5 : index
    %c0_92 = arith.constant 0 : index
    %c0_93 = arith.constant 0 : index
    %154 = vector.load %arg7[%c0_90, %c5_91, %c0_92, %c0_93] : memref<1x6x1x128xf32, #tpu.memory_space<vmem>>, vector<1x1x1x128xf32>
    %155 = vector.shape_cast %154 : vector<1x1x1x128xf32> to vector<1x128xf32>
    %156 = vector.broadcast %155 : vector<1x128xf32> to vector<16x128xf32>
    %157 = arith.addf %153, %156 : vector<16x128xf32>
    %158 = vector.shape_cast %157 : vector<16x128xf32> to vector<2x8x128xf32>
    %cst_94 = arith.constant 0.000000e+00 : f32
    %159 = vector.broadcast %cst_94 : f32 to vector<2x8x128xf32>
    %160 = arith.maximumf %158, %159 : vector<2x8x128xf32>
    %161 = arith.addf %160, %122 : vector<2x8x128xf32>
    %cst_95 = arith.constant 0.000000e+00 : f32
    %162 = vector.broadcast %cst_95 : f32 to vector<2x8x128xf32>
    %163 = arith.maximumf %161, %162 : vector<2x8x128xf32>
    %164 = vector.shape_cast %163 : vector<2x8x128xf32> to vector<16x128xf32>
    %165 = arith.truncf %164 : vector<16x128xf32> to vector<16x128xbf16>
    %c0_96 = arith.constant 0 : index
    %c0_97 = arith.constant 0 : index
    %c0_98 = arith.constant 0 : index
    %166 = vector.load %arg8[%c0_96, %c0_97, %c0_98] : memref<1x128x128xbf16, #tpu.memory_space<vmem>>, vector<1x128x128xbf16>
    %167 = vector.shape_cast %166 : vector<1x128x128xbf16> to vector<128x128xbf16>
    %cst_99 = arith.constant dense<0.000000e+00> : vector<16x128xf32>
    %168 = tpu.matmul %165, %167, %cst_99 {dimension_numbers = #tpu.dot_dimension_numbers<[1], [0], [0], [1], [0, 0, 1, 1], [], []>} : vector<16x128xbf16>, vector<128x128xbf16>, vector<16x128xf32> -> vector<16x128xf32>
    %c0_100 = arith.constant 0 : index
    %c0_101 = arith.constant 0 : index
    %c0_102 = arith.constant 0 : index
    %169 = vector.load %arg9[%c0_100, %c0_101, %c0_102] : memref<1x1x128xf32, #tpu.memory_space<vmem>>, vector<1x1x128xf32>
    %170 = vector.shape_cast %169 : vector<1x1x128xf32> to vector<1x128xf32>
    %171 = vector.broadcast %170 : vector<1x128xf32> to vector<16x128xf32>
    %172 = arith.addf %168, %171 : vector<16x128xf32>
    %173 = vector.shape_cast %172 : vector<16x128xf32> to vector<2x8x128xf32>
    %c0_103 = arith.constant 0 : index
    %c0_104 = arith.constant 0 : index
    %c0_105 = arith.constant 0 : index
    %c0_106 = arith.constant 0 : index
    %174 = vector.load %arg14[%c0_103, %c0_104, %c0_105, %c0_106] : memref<1x2x8x128xf32, #tpu.memory_space<vmem>>, vector<1x2x8x128xf32>
    %175 = vector.shape_cast %174 : vector<1x2x8x128xf32> to vector<2x8x128xf32>
    %176 = vector.shape_cast %173 : vector<2x8x128xf32> to vector<1x2x8x128xf32>
    tpu.vector_store %arg14[%c0_103, %c0_104, %c0_105, %c0_106], %176 {strides = array<i32>} : memref<1x2x8x128xf32, #tpu.memory_space<vmem>>, vector<1x2x8x128xf32>,
    %c0_107 = arith.constant 0 : index
    %177 = memref.load %arg1[%c0_107] : memref<1xi32, #tpu.memory_space<smem>>
    %c0_108 = arith.constant 0 : index
    %c0_109 = arith.constant 0 : index
    %178 = arith.index_cast %177 : i32 to index
    %c0_110 = arith.constant 0 : index
    %179 = vector.load %arg14[%c0_108, %c0_109, %178, %c0_110] : memref<1x2x8x128xf32, #tpu.memory_space<vmem>>, vector<1x2x1x128xf32>
    %180 = vector.shape_cast %179 : vector<1x2x1x128xf32> to vector<2x1x128xf32>
    %181 = vector.shape_cast %180 : vector<2x1x128xf32> to vector<2x128xf32>
    %182 = arith.truncf %181 : vector<2x128xf32> to vector<2x128xbf16>
    %c0_111 = arith.constant 0 : index
    %c0_112 = arith.constant 0 : index
    %c0_113 = arith.constant 0 : index
    %183 = vector.load %arg10[%c0_111, %c0_112, %c0_113] : memref<1x128x128xbf16, #tpu.memory_space<vmem>>, vector<1x128x128xbf16>
    %184 = vector.shape_cast %183 : vector<1x128x128xbf16> to vector<128x128xbf16>
    %cst_114 = arith.constant dense<0.000000e+00> : vector<2x128xf32>
    %185 = tpu.matmul %182, %184, %cst_114 {dimension_numbers = #tpu.dot_dimension_numbers<[1], [0], [0], [1], [0, 0, 1, 1], [], []>} : vector<2x128xbf16>, vector<128x128xbf16>, vector<2x128xf32> -> vector<2x128xf32>
    %c0_115 = arith.constant 0 : index
    %c0_116 = arith.constant 0 : index
    %c0_117 = arith.constant 0 : index
    %186 = vector.load %arg11[%c0_115, %c0_116, %c0_117] : memref<1x1x128xf32, #tpu.memory_space<vmem>>, vector<1x1x128xf32>
    %187 = vector.shape_cast %186 : vector<1x1x128xf32> to vector<1x128xf32>
    %188 = vector.broadcast %187 : vector<1x128xf32> to vector<2x128xf32>
    %189 = arith.addf %185, %188 : vector<2x128xf32>
    %cst_118 = arith.constant 0.000000e+00 : f32
    %190 = vector.broadcast %cst_118 : f32 to vector<2x128xf32>
    %191 = arith.maximumf %189, %190 : vector<2x128xf32>
    %192 = arith.truncf %191 : vector<2x128xf32> to vector<2x128xbf16>
    %c0_119 = arith.constant 0 : index
    %c0_120 = arith.constant 0 : index
    %c0_121 = arith.constant 0 : index
    %193 = vector.load %arg12[%c0_119, %c0_120, %c0_121] : memref<1x128x128xbf16, #tpu.memory_space<vmem>>, vector<1x128x128xbf16>
    %194 = vector.shape_cast %193 : vector<1x128x128xbf16> to vector<128x128xbf16>
    %cst_122 = arith.constant dense<0.000000e+00> : vector<2x128xf32>
    %195 = tpu.matmul %192, %194, %cst_122 {dimension_numbers = #tpu.dot_dimension_numbers<[1], [0], [0], [1], [0, 0, 1, 1], [], []>} : vector<2x128xbf16>, vector<128x128xbf16>, vector<2x128xf32> -> vector<2x128xf32>
    %c0_123 = arith.constant 0 : index
    %c0_124 = arith.constant 0 : index
    %c0_125 = arith.constant 0 : index
    %196 = vector.load %arg13[%c0_123, %c0_124, %c0_125] : memref<1x1x128xf32, #tpu.memory_space<vmem>>, vector<1x1x128xf32>
    %197 = vector.shape_cast %196 : vector<1x1x128xf32> to vector<1x128xf32>
    %198 = vector.broadcast %197 : vector<1x128xf32> to vector<2x128xf32>
    %199 = arith.addf %195, %198 : vector<2x128xf32>
    %c0_126 = arith.constant 0 : index
    %c0_127 = arith.constant 0 : index
    %c0_128 = arith.constant 0 : index
    %200 = vector.load %arg15[%c0_126, %c0_127, %c0_128] : memref<1x2x128xf32, #tpu.memory_space<vmem>>, vector<1x2x128xf32>
    %201 = vector.shape_cast %200 : vector<1x2x128xf32> to vector<2x128xf32>
    %202 = vector.shape_cast %199 : vector<2x128xf32> to vector<1x2x128xf32>
    tpu.vector_store %arg15[%c0_126, %c0_127, %c0_128], %202 {strides = array<i32>} : memref<1x2x128xf32, #tpu.memory_space<vmem>>, vector<1x2x128xf32>,
    return
  }
  func.func @transform_0(%arg0: i32, %arg1: memref<1xi32, #tpu.memory_space<smem>>) -> (i32, i32, i32, i32) {
    %c0_i32 = arith.constant 0 : i32
    %c0_i32_0 = arith.constant 0 : i32
    %c0_i32_1 = arith.constant 0 : i32
    %c0_i32_2 = arith.constant 0 : i32
    return %arg0, %c0_i32, %c0_i32_0, %c0_i32_1 : i32, i32, i32, i32
  }
  func.func @transform_1(%arg0: i32, %arg1: memref<1xi32, #tpu.memory_space<smem>>) -> (i32, i32, i32, i32) {
    %c0_i32 = arith.constant 0 : i32
    %c0_i32_0 = arith.constant 0 : i32
    %c0_i32_1 = arith.constant 0 : i32
    %c0_i32_2 = arith.constant 0 : i32
    return %arg0, %c0_i32, %c0_i32_0, %c0_i32_1 : i32, i32, i32, i32
  }
  func.func @transform_2(%arg0: i32, %arg1: memref<1xi32, #tpu.memory_space<smem>>) -> (i32, i32, i32) {
    %c0_i32 = arith.constant 0 : i32
    %c0_i32_0 = arith.constant 0 : i32
    %c0_i32_1 = arith.constant 0 : i32
    return %arg0, %c0_i32, %c0_i32_0 : i32, i32, i32
  }
  func.func @transform_3(%arg0: i32, %arg1: memref<1xi32, #tpu.memory_space<smem>>) -> (i32, i32, i32) {
    %c0_i32 = arith.constant 0 : i32
    %c0_i32_0 = arith.constant 0 : i32
    %c0_i32_1 = arith.constant 0 : i32
    return %arg0, %c0_i32, %c0_i32_0 : i32, i32, i32
  }
  func.func @transform_4(%arg0: i32, %arg1: memref<1xi32, #tpu.memory_space<smem>>) -> (i32, i32, i32, i32) {
    %c0_i32 = arith.constant 0 : i32
    %c0_i32_0 = arith.constant 0 : i32
    %c0_i32_1 = arith.constant 0 : i32
    %c0_i32_2 = arith.constant 0 : i32
    return %arg0, %c0_i32, %c0_i32_0, %c0_i32_1 : i32, i32, i32, i32
  }
  func.func @transform_5(%arg0: i32, %arg1: memref<1xi32, #tpu.memory_space<smem>>) -> (i32, i32, i32, i32) {
    %c0_i32 = arith.constant 0 : i32
    %c0_i32_0 = arith.constant 0 : i32
    %c0_i32_1 = arith.constant 0 : i32
    %c0_i32_2 = arith.constant 0 : i32
    return %arg0, %c0_i32, %c0_i32_0, %c0_i32_1 : i32, i32, i32, i32
  }
  func.func @transform_6(%arg0: i32, %arg1: memref<1xi32, #tpu.memory_space<smem>>) -> (i32, i32, i32) {
    %c0_i32 = arith.constant 0 : i32
    %c0_i32_0 = arith.constant 0 : i32
    %c0_i32_1 = arith.constant 0 : i32
    return %arg0, %c0_i32, %c0_i32_0 : i32, i32, i32
  }
  func.func @transform_7(%arg0: i32, %arg1: memref<1xi32, #tpu.memory_space<smem>>) -> (i32, i32, i32) {
    %c0_i32 = arith.constant 0 : i32
    %c0_i32_0 = arith.constant 0 : i32
    %c0_i32_1 = arith.constant 0 : i32
    return %arg0, %c0_i32, %c0_i32_0 : i32, i32, i32
  }
  func.func @transform_8(%arg0: i32, %arg1: memref<1xi32, #tpu.memory_space<smem>>) -> (i32, i32, i32) {
    %c0_i32 = arith.constant 0 : i32
    %c0_i32_0 = arith.constant 0 : i32
    %c0_i32_1 = arith.constant 0 : i32
    return %arg0, %c0_i32, %c0_i32_0 : i32, i32, i32
  }
  func.func @transform_9(%arg0: i32, %arg1: memref<1xi32, #tpu.memory_space<smem>>) -> (i32, i32, i32) {
    %c0_i32 = arith.constant 0 : i32
    %c0_i32_0 = arith.constant 0 : i32
    %c0_i32_1 = arith.constant 0 : i32
    return %arg0, %c0_i32, %c0_i32_0 : i32, i32, i32
  }
  func.func @transform_10(%arg0: i32, %arg1: memref<1xi32, #tpu.memory_space<smem>>) -> (i32, i32, i32) {
    %c0_i32 = arith.constant 0 : i32
    %c0_i32_0 = arith.constant 0 : i32
    %c0_i32_1 = arith.constant 0 : i32
    return %arg0, %c0_i32, %c0_i32_0 : i32, i32, i32
  }
  func.func @transform_11(%arg0: i32, %arg1: memref<1xi32, #tpu.memory_space<smem>>) -> (i32, i32, i32) {
    %c0_i32 = arith.constant 0 : i32
    %c0_i32_0 = arith.constant 0 : i32
    %c0_i32_1 = arith.constant 0 : i32
    return %arg0, %c0_i32, %c0_i32_0 : i32, i32, i32
  }
  func.func @transform_12(%arg0: i32, %arg1: memref<1xi32, #tpu.memory_space<smem>>) -> (i32, i32, i32, i32) {
    %c0_i32 = arith.constant 0 : i32
    %c0_i32_0 = arith.constant 0 : i32
    %c0_i32_1 = arith.constant 0 : i32
    %c0_i32_2 = arith.constant 0 : i32
    return %arg0, %c0_i32, %c0_i32_0, %c0_i32_1 : i32, i32, i32, i32
  }
  func.func @transform_13(%arg0: i32, %arg1: memref<1xi32, #tpu.memory_space<smem>>) -> (i32, i32, i32) {
    %c0_i32 = arith.constant 0 : i32
    %c0_i32_0 = arith.constant 0 : i32
    %c0_i32_1 = arith.constant 0 : i32
    return %arg0, %c0_i32, %c0_i32_0 : i32, i32, i32
  }
}

</mosaic_0001>

<llo_original>
// kernel: tcn_moco_pretrain_forward.1
$region0: #{tcn_moco_pretrain_forward.1}
  #allocation0 [shape = 'u32[]', space=smem, size = 0x4, offset = 0x4, fixed_abs, tag = 'smem constant byte address 0x4 - core index']
  #allocation1 [shape = 'u32[144,128]{1,0:T(1,128)}', space=vmem, size = 0x12000, scoped, tag = 'internal scratch']
  #allocation2 [shape = 's32[1]{0}', space=sflag, size = 0x4, scoped, tag = 'scoped memory for tcn_moco_pretrain_forward.1']
  #allocation3 [shape = 's32[1]{0:T(128)S(6)}', space=smem, size = 0x200, scoped, tag = 'prefetched SMEM operand 0']
  %s0 = inlined_call_operand.<no memory space> [shape: s32[1], index: 0, kind: input, shape index: {}]
  %s1 = inlined_call_operand.vmem [shape: f32[2,2,8,4], index: 1, kind: input, shape index: {}]
  %s2 = inlined_call_operand.vmem [shape: f32[2,2,8,1], index: 2, kind: input, shape index: {}]
  %s3 = inlined_call_operand.vmem [shape: bf16[2,4,128], index: 3, kind: input, shape index: {}]
  %s4 = inlined_call_operand.vmem [shape: f32[2,1,128], index: 4, kind: input, shape index: {}]
  %s5 = inlined_call_operand.vmem [shape: bf16[2,6,128,128], index: 5, kind: input, shape index: {}]
  %s6 = inlined_call_operand.vmem [shape: f32[2,6,1,128], index: 6, kind: input, shape index: {}]
  %s7 = inlined_call_operand.vmem [shape: bf16[2,128,128], index: 7, kind: input, shape index: {}]
  %s8 = inlined_call_operand.vmem [shape: f32[2,1,128], index: 8, kind: input, shape index: {}]
  %s9 = inlined_call_operand.vmem [shape: bf16[2,128,128], index: 9, kind: input, shape index: {}]
  %s10 = inlined_call_operand.vmem [shape: f32[2,1,128], index: 10, kind: input, shape index: {}]
  %s11 = inlined_call_operand.vmem [shape: bf16[2,128,128], index: 11, kind: input, shape index: {}]
  %s12 = inlined_call_operand.vmem [shape: f32[2,1,128], index: 12, kind: input, shape index: {}]
  %s13 = inlined_call_operand.vmem [shape: f32[2,2,8,128], index: 13, kind: output, shape index: {0}]
  %s14 = inlined_call_operand.vmem [shape: f32[2,2,128], index: 14, kind: output, shape index: {1}]
  %15 = xla_tuple %s13, %s14
  %s16 = sld [smem:[#allocation0]]
  $region89: #{tcn_moco_pretrain_forward.1} parent=0
    _
  %s18 = ssub.s32 1, %s16
  %s19 = scalar_select 0, %s18, %s16
  %20 = sst [smem:[#allocation3]] %s0
  loop: start=0, step=1, limit=4
  $region2: #{tcn_moco_pretrain_forward.1} parent=0 // loop_pre_header
    _
  $region3: #{tcn_moco_pretrain_forward.1} parent=0 // loop_header
    %s22 = sphi 0, %s26
    %p23 = scmp.ge.s32.totalorder %s22, 4
    %s32 = sphi 0, %s34
    %s35 = sphi 0, %s32
    %s36 = sphi 0, %s35
    %s52 = sphi 0, %s36
    %s58 = sphi 0, %s60
    %s61 = sphi 0, %s58
    %s62 = sphi 0, %s61
    %s78 = sphi 0, %s62
    %s84 = sphi 0, %s86
    %s87 = sphi 0, %s84
    %s88 = sphi 0, %s87
    %s104 = sphi 0, %s88
    %s110 = sphi 0, %s112
    %s113 = sphi 0, %s110
    %s114 = sphi 0, %s113
    %s130 = sphi 0, %s114
    %s136 = sphi 0, %s138
    %s139 = sphi 0, %s136
    %s140 = sphi 0, %s139
    %s156 = sphi 0, %s140
    %s162 = sphi 0, %s164
    %s165 = sphi 0, %s162
    %s166 = sphi 0, %s165
    %s182 = sphi 0, %s166
    %s188 = sphi 0, %s190
    %s191 = sphi 0, %s188
    %s192 = sphi 0, %s191
    %s208 = sphi 0, %s192
    %s214 = sphi 0, %s216
    %s217 = sphi 0, %s214
    %s218 = sphi 0, %s217
    %s234 = sphi 0, %s218
    %s240 = sphi 0, %s242
    %s243 = sphi 0, %s240
    %s244 = sphi 0, %s243
    %s260 = sphi 0, %s244
    %s266 = sphi 0, %s268
    %s269 = sphi 0, %s266
    %s270 = sphi 0, %s269
    %s286 = sphi 0, %s270
    %s292 = sphi 0, %s294
    %s295 = sphi 0, %s292
    %s296 = sphi 0, %s295
    %s312 = sphi 0, %s296
    %s318 = sphi 0, %s320
    %s321 = sphi 0, %s318
    %s322 = sphi 0, %s321
    %s338 = sphi 0, %s322
    %s344 = sphi 0, %s346
    %s347 = sphi 0, %s344
    %s348 = sphi 0, %s347
    %s364 = sphi 0, %s348
    %s370 = sphi 0, %s372
    %s373 = sphi 0, %s370
    %s374 = sphi 0, %s373
    %s390 = sphi 0, %s374
  $region4: #{tcn_moco_pretrain_forward.1} parent=0 // loop_header_branch
    %25 = sbr.rel (%p23) target = $region8
  $region5: #{tcn_moco_pretrain_forward.1} parent=0 // loop_body
    %s27 = ssub.s32 %s22, 1
    %s28 = ssub.s32 %s22, 2
    %s29 = sadd.s32 %s22, 1
    %s30 = ssub.s32 %s22, %s29
    %p31 = scmp.eq.s32.totalorder %s30, 0
    %s33 = sadd.s32 %s32, 1
    %s34 = scalar_select %p31, %s32, %s33
    %p37 = pneg %p31
    %p38 = scmp.eq.s32.totalorder %s22, 1
    %p39 = por %p37, %p38
    %p40 = scmp.ne.s32.totalorder %s32, %s35
    %p41 = scmp.eq.s32.totalorder %s22, 0
    %p42 = por %p40, %p41
    %p43 = scmp.ne.s32.totalorder %s32, %s35
    %p44 = scmp.eq.s32.totalorder %s27, 1
    %p45 = por %p43, %p44
    %p46 = scmp.ne.s32.totalorder %s35, %s36
    %p47 = scmp.eq.s32.totalorder %s27, 0
    %p48 = por %p46, %p47
    %p49 = scmp.ne.s32.totalorder %s35, %s36
    %p50 = scmp.eq.s32.totalorder %s28, 1
    %p51 = por %p49, %p50
    %p53 = scmp.ne.s32.totalorder %s36, %s52
    %p54 = scmp.eq.s32.totalorder %s28, 0
    %p55 = por %p53, %p54
    %s56 = ssub.s32 %s22, %s29
    %p57 = scmp.eq.s32.totalorder %s56, 0
    %s59 = sadd.s32 %s58, 1
    %s60 = scalar_select %p57, %s58, %s59
    %p63 = pneg %p57
    %p64 = scmp.eq.s32.totalorder %s22, 1
    %p65 = por %p63, %p64
    %p66 = scmp.ne.s32.totalorder %s58, %s61
    %p67 = scmp.eq.s32.totalorder %s22, 0
    %p68 = por %p66, %p67
    %p69 = scmp.ne.s32.totalorder %s58, %s61
    %p70 = scmp.eq.s32.totalorder %s27, 1
    %p71 = por %p69, %p70
    %p72 = scmp.ne.s32.totalorder %s61, %s62
    %p73 = scmp.eq.s32.totalorder %s27, 0
    %p74 = por %p72, %p73
    %p75 = scmp.ne.s32.totalorder %s61, %s62
    %p76 = scmp.eq.s32.totalorder %s28, 1
    %p77 = por %p75, %p76
    %p79 = scmp.ne.s32.totalorder %s62, %s78
    %p80 = scmp.eq.s32.totalorder %s28, 0
    %p81 = por %p79, %p80
    %s82 = ssub.s32 %s22, %s29
    %p83 = scmp.eq.s32.totalorder %s82, 0
    %s85 = sadd.s32 %s84, 1
    %s86 = scalar_select %p83, %s84, %s85
    %p89 = pneg %p83
    %p90 = scmp.eq.s32.totalorder %s22, 1
    %p91 = por %p89, %p90
    %p92 = scmp.ne.s32.totalorder %s84, %s87
    %p93 = scmp.eq.s32.totalorder %s22, 0
    %p94 = por %p92, %p93
    %p95 = scmp.ne.s32.totalorder %s84, %s87
    %p96 = scmp.eq.s32.totalorder %s27, 1
    %p97 = por %p95, %p96
    %p98 = scmp.ne.s32.totalorder %s87, %s88
    %p99 = scmp.eq.s32.totalorder %s27, 0
    %p100 = por %p98, %p99
    %p101 = scmp.ne.s32.totalorder %s87, %s88
    %p102 = scmp.eq.s32.totalorder %s28, 1
    %p103 = por %p101, %p102
    %p105 = scmp.ne.s32.totalorder %s88, %s104
    %p106 = scmp.eq.s32.totalorder %s28, 0
    %p107 = por %p105, %p106
    %s108 = ssub.s32 %s22, %s29
    %p109 = scmp.eq.s32.totalorder %s108, 0
    %s111 = sadd.s32 %s110, 1
    %s112 = scalar_select %p109, %s110, %s111
    %p115 = pneg %p109
    %p116 = scmp.eq.s32.totalorder %s22, 1
    %p117 = por %p115, %p116
    %p118 = scmp.ne.s32.totalorder %s110, %s113
    %p119 = scmp.eq.s32.totalorder %s22, 0
    %p120 = por %p118, %p119
    %p121 = scmp.ne.s32.totalorder %s110, %s113
    %p122 = scmp.eq.s32.totalorder %s27, 1
    %p123 = por %p121, %p122
    %p124 = scmp.ne.s32.totalorder %s113, %s114
    %p125 = scmp.eq.s32.totalorder %s27, 0
    %p126 = por %p124, %p125
    %p127 = scmp.ne.s32.totalorder %s113, %s114
    %p128 = scmp.eq.s32.totalorder %s28, 1
    %p129 = por %p127, %p128
    %p131 = scmp.ne.s32.totalorder %s114, %s130
    %p132 = scmp.eq.s32.totalorder %s28, 0
    %p133 = por %p131, %p132
    %s134 = ssub.s32 %s22, %s29
    %p135 = scmp.eq.s32.totalorder %s134, 0
    %s137 = sadd.s32 %s136, 1
    %s138 = scalar_select %p135, %s136, %s137
    %p141 = pneg %p135
    %p142 = scmp.eq.s32.totalorder %s22, 1
    %p143 = por %p141, %p142
    %p144 = scmp.ne.s32.totalorder %s136, %s139
    %p145 = scmp.eq.s32.totalorder %s22, 0
    %p146 = por %p144, %p145
    %p147 = scmp.ne.s32.totalorder %s136, %s139
    %p148 = scmp.eq.s32.totalorder %s27, 1
    %p149 = por %p147, %p148
    %p150 = scmp.ne.s32.totalorder %s139, %s140
    %p151 = scmp.eq.s32.totalorder %s27, 0
    %p152 = por %p150, %p151
    %p153 = scmp.ne.s32.totalorder %s139, %s140
    %p154 = scmp.eq.s32.totalorder %s28, 1
    %p155 = por %p153, %p154
    %p157 = scmp.ne.s32.totalorder %s140, %s156
    %p158 = scmp.eq.s32.totalorder %s28, 0
    %p159 = por %p157, %p158
    %s160 = ssub.s32 %s22, %s29
    %p161 = scmp.eq.s32.totalorder %s160, 0
    %s163 = sadd.s32 %s162, 1
    %s164 = scalar_select %p161, %s162, %s163
    %p167 = pneg %p161
    %p168 = scmp.eq.s32.totalorder %s22, 1
    %p169 = por %p167, %p168
    %p170 = scmp.ne.s32.totalorder %s162, %s165
    %p171 = scmp.eq.s32.totalorder %s22, 0
    %p172 = por %p170, %p171
    %p173 = scmp.ne.s32.totalorder %s162, %s165
    %p174 = scmp.eq.s32.totalorder %s27, 1
    %p175 = por %p173, %p174
    %p176 = scmp.ne.s32.totalorder %s165, %s166
    %p177 = scmp.eq.s32.totalorder %s27, 0
    %p178 = por %p176, %p177
    %p179 = scmp.ne.s32.totalorder %s165, %s166
    %p180 = scmp.eq.s32.totalorder %s28, 1
    %p181 = por %p179, %p180
    %p183 = scmp.ne.s32.totalorder %s166, %s182
    %p184 = scmp.eq.s32.totalorder %s28, 0
    %p185 = por %p183, %p184
    %s186 = ssub.s32 %s22, %s29
    %p187 = scmp.eq.s32.totalorder %s186, 0
    %s189 = sadd.s32 %s188, 1
    %s190 = scalar_select %p187, %s188, %s189
    %p193 = pneg %p187
    %p194 = scmp.eq.s32.totalorder %s22, 1
    %p195 = por %p193, %p194
    %p196 = scmp.ne.s32.totalorder %s188, %s191
    %p197 = scmp.eq.s32.totalorder %s22, 0
    %p198 = por %p196, %p197
    %p199 = scmp.ne.s32.totalorder %s188, %s191
    %p200 = scmp.eq.s32.totalorder %s27, 1
    %p201 = por %p199, %p200
    %p202 = scmp.ne.s32.totalorder %s191, %s192
    %p203 = scmp.eq.s32.totalorder %s27, 0
    %p204 = por %p202, %p203
    %p205 = scmp.ne.s32.totalorder %s191, %s192
    %p206 = scmp.eq.s32.totalorder %s28, 1
    %p207 = por %p205, %p206
    %p209 = scmp.ne.s32.totalorder %s192, %s208
    %p210 = scmp.eq.s32.totalorder %s28, 0
    %p211 = por %p209, %p210
    %s212 = ssub.s32 %s22, %s29
    %p213 = scmp.eq.s32.totalorder %s212, 0
    %s215 = sadd.s32 %s214, 1
    %s216 = scalar_select %p213, %s214, %s215
    %p219 = pneg %p213
    %p220 = scmp.eq.s32.totalorder %s22, 1
    %p221 = por %p219, %p220
    %p222 = scmp.ne.s32.totalorder %s214, %s217
    %p223 = scmp.eq.s32.totalorder %s22, 0
    %p224 = por %p222, %p223
    %p225 = scmp.ne.s32.totalorder %s214, %s217
    %p226 = scmp.eq.s32.totalorder %s27, 1
    %p227 = por %p225, %p226
    %p228 = scmp.ne.s32.totalorder %s217, %s218
    %p229 = scmp.eq.s32.totalorder %s27, 0
    %p230 = por %p228, %p229
    %p231 = scmp.ne.s32.totalorder %s217, %s218
    %p232 = scmp.eq.s32.totalorder %s28, 1
    %p233 = por %p231, %p232
    %p235 = scmp.ne.s32.totalorder %s218, %s234
    %p236 = scmp.eq.s32.totalorder %s28, 0
    %p237 = por %p235, %p236
    %s238 = ssub.s32 %s22, %s29
    %p239 = scmp.eq.s32.totalorder %s238, 0
    %s241 = sadd.s32 %s240, 1
    %s242 = scalar_select %p239, %s240, %s241
    %p245 = pneg %p239
    %p246 = scmp.eq.s32.totalorder %s22, 1
    %p247 = por %p245, %p246
    %p248 = scmp.ne.s32.totalorder %s240, %s243
    %p249 = scmp.eq.s32.totalorder %s22, 0
    %p250 = por %p248, %p249
    %p251 = scmp.ne.s32.totalorder %s240, %s243
    %p252 = scmp.eq.s32.totalorder %s27, 1
    %p253 = por %p251, %p252
    %p254 = scmp.ne.s32.totalorder %s243, %s244
    %p255 = scmp.eq.s32.totalorder %s27, 0
    %p256 = por %p254, %p255
    %p257 = scmp.ne.s32.totalorder %s243, %s244
    %p258 = scmp.eq.s32.totalorder %s28, 1
    %p259 = por %p257, %p258
    %p261 = scmp.ne.s32.totalorder %s244, %s260
    %p262 = scmp.eq.s32.totalorder %s28, 0
    %p263 = por %p261, %p262
    %s264 = ssub.s32 %s22, %s29
    %p265 = scmp.eq.s32.totalorder %s264, 0
    %s267 = sadd.s32 %s266, 1
    %s268 = scalar_select %p265, %s266, %s267
    %p271 = pneg %p265
    %p272 = scmp.eq.s32.totalorder %s22, 1
    %p273 = por %p271, %p272
    %p274 = scmp.ne.s32.totalorder %s266, %s269
    %p275 = scmp.eq.s32.totalorder %s22, 0
    %p276 = por %p274, %p275
    %p277 = scmp.ne.s32.totalorder %s266, %s269
    %p278 = scmp.eq.s32.totalorder %s27, 1
    %p279 = por %p277, %p278
    %p280 = scmp.ne.s32.totalorder %s269, %s270
    %p281 = scmp.eq.s32.totalorder %s27, 0
    %p282 = por %p280, %p281
    %p283 = scmp.ne.s32.totalorder %s269, %s270
    %p284 = scmp.eq.s32.totalorder %s28, 1
    %p285 = por %p283, %p284
    %p287 = scmp.ne.s32.totalorder %s270, %s286
    %p288 = scmp.eq.s32.totalorder %s28, 0
    %p289 = por %p287, %p288
    %s290 = ssub.s32 %s22, %s29
    %p291 = scmp.eq.s32.totalorder %s290, 0
    %s293 = sadd.s32 %s292, 1
    %s294 = scalar_select %p291, %s292, %s293
    %p297 = pneg %p291
    %p298 = scmp.eq.s32.totalorder %s22, 1
    %p299 = por %p297, %p298
    %p300 = scmp.ne.s32.totalorder %s292, %s295
    %p301 = scmp.eq.s32.totalorder %s22, 0
    %p302 = por %p300, %p301
    %p303 = scmp.ne.s32.totalorder %s292, %s295
    %p304 = scmp.eq.s32.totalorder %s27, 1
    %p305 = por %p303, %p304
    %p306 = scmp.ne.s32.totalorder %s295, %s296
    %p307 = scmp.eq.s32.totalorder %s27, 0
    %p308 = por %p306, %p307
    %p309 = scmp.ne.s32.totalorder %s295, %s296
    %p310 = scmp.eq.s32.totalorder %s28, 1
    %p311 = por %p309, %p310
    %p313 = scmp.ne.s32.totalorder %s296, %s312
    %p314 = scmp.eq.s32.totalorder %s28, 0
    %p315 = por %p313, %p314
    %s316 = ssub.s32 %s22, %s29
    %p317 = scmp.eq.s32.totalorder %s316, 0
    %s319 = sadd.s32 %s318, 1
    %s320 = scalar_select %p317, %s318, %s319
    %p323 = pneg %p317
    %p324 = scmp.eq.s32.totalorder %s22, 1
    %p325 = por %p323, %p324
    %p326 = scmp.ne.s32.totalorder %s318, %s321
    %p327 = scmp.eq.s32.totalorder %s22, 0
    %p328 = por %p326, %p327
    %p329 = scmp.ne.s32.totalorder %s318, %s321
    %p330 = scmp.eq.s32.totalorder %s27, 1
    %p331 = por %p329, %p330
    %p332 = scmp.ne.s32.totalorder %s321, %s322
    %p333 = scmp.eq.s32.totalorder %s27, 0
    %p334 = por %p332, %p333
    %p335 = scmp.ne.s32.totalorder %s321, %s322
    %p336 = scmp.eq.s32.totalorder %s28, 1
    %p337 = por %p335, %p336
    %p339 = scmp.ne.s32.totalorder %s322, %s338
    %p340 = scmp.eq.s32.totalorder %s28, 0
    %p341 = por %p339, %p340
    %s342 = ssub.s32 %s22, %s29
    %p343 = scmp.eq.s32.totalorder %s342, 0
    %s345 = sadd.s32 %s344, 1
    %s346 = scalar_select %p343, %s344, %s345
    %p349 = pneg %p343
    %p350 = scmp.eq.s32.totalorder %s22, 1
    %p351 = por %p349, %p350
    %p352 = scmp.ne.s32.totalorder %s344, %s347
    %p353 = scmp.eq.s32.totalorder %s22, 0
    %p354 = por %p352, %p353
    %p355 = scmp.ne.s32.totalorder %s344, %s347
    %p356 = scmp.eq.s32.totalorder %s27, 1
    %p357 = por %p355, %p356
    %p358 = scmp.ne.s32.totalorder %s347, %s348
    %p359 = scmp.eq.s32.totalorder %s27, 0
    %p360 = por %p358, %p359
    %p361 = scmp.ne.s32.totalorder %s347, %s348
    %p362 = scmp.eq.s32.totalorder %s28, 1
    %p363 = por %p361, %p362
    %p365 = scmp.ne.s32.totalorder %s348, %s364
    %p366 = scmp.eq.s32.totalorder %s28, 0
    %p367 = por %p365, %p366
    %s368 = ssub.s32 %s22, %s29
    %p369 = scmp.eq.s32.totalorder %s368, 0
    %s371 = sadd.s32 %s370, 1
    %s372 = scalar_select %p369, %s370, %s371
    %p375 = pneg %p369
    %p376 = scmp.eq.s32.totalorder %s22, 1
    %p377 = por %p375, %p376
    %p378 = scmp.ne.s32.totalorder %s370, %s373
    %p379 = scmp.eq.s32.totalorder %s22, 0
    %p380 = por %p378, %p379
    %p381 = scmp.ne.s32.totalorder %s370, %s373
    %p382 = scmp.eq.s32.totalorder %s27, 1
    %p383 = por %p381, %p382
    %p384 = scmp.ne.s32.totalorder %s373, %s374
    %p385 = scmp.eq.s32.totalorder %s27, 0
    %p386 = por %p384, %p385
    %p387 = scmp.ne.s32.totalorder %s373, %s374
    %p388 = scmp.eq.s32.totalorder %s28, 1
    %p389 = por %p387, %p388
    %p391 = scmp.ne.s32.totalorder %s374, %s390
    %p392 = scmp.eq.s32.totalorder %s28, 0
    %p393 = por %p391, %p392
    %p394 = scmp.le.s32.totalorder 1, %s22
    %p395 = scmp.lt.s32.totalorder %s22, 3
    %p396 = pnand %p394, %p395
    %p397 = pneg %p396
    // Predicated region
    $region9: #{tcn_moco_pretrain_forward.1} parent=5 // pred_check
      _
    $region10: #{tcn_moco_pretrain_forward.1} parent=5 // pred_check_branch
      %399 = sbr.rel (%p396) target = $region12
    $region11: #{tcn_moco_pretrain_forward.1} parent=5 // pred_region
      %s400 = ssub.s32 %s22, 1
    $region12: #{tcn_moco_pretrain_forward.1} parent=5 // pred_fallthru
      _
    %p401 = scmp.lt.s32.totalorder %s22, 2
    // Predicated region
    $region13: #{tcn_moco_pretrain_forward.1} parent=5 // pred_check
      %p402 = pneg %p401
    $region14: #{tcn_moco_pretrain_forward.1} parent=5 // pred_check_branch
      %404 = sbr.rel (%p402) target = $region16
    $region15: #{tcn_moco_pretrain_forward.1} parent=5 // pred_region
      // Predicated region
      $region17: #{tcn_moco_pretrain_forward.1} parent=15 // pred_check
        %p405 = pneg %p42
      $region18: #{tcn_moco_pretrain_forward.1} parent=15 // pred_check_branch
        %407 = sbr.rel (%p405) target = $region20
      $region19: #{tcn_moco_pretrain_forward.1} parent=15 // pred_region
        %p408 = scmp.lt.s32.totalorder %s22, 1
        %s409 = scalar_select %p408, %s22, 1
        %s410 = smul.addr %s409, 2
        %s411 = smul.addr %s410, 8
        %s412 = scalar_lea.vmem %s1, %s411
      $region20: #{tcn_moco_pretrain_forward.1} parent=15 // pred_fallthru
        _
      // Predicated region
      $region21: #{tcn_moco_pretrain_forward.1} parent=15 // pred_check
        %p413 = pneg %p68
      $region22: #{tcn_moco_pretrain_forward.1} parent=15 // pred_check_branch
        %415 = sbr.rel (%p413) target = $region24
      $region23: #{tcn_moco_pretrain_forward.1} parent=15 // pred_region
        %p416 = scmp.lt.s32.totalorder %s22, 1
        %s417 = scalar_select %p416, %s22, 1
        %s418 = smul.addr %s417, 2
        %s419 = smul.addr %s418, 8
        %s420 = scalar_lea.vmem %s2, %s419
      $region24: #{tcn_moco_pretrain_forward.1} parent=15 // pred_fallthru
        _
      // Predicated region
      $region25: #{tcn_moco_pretrain_forward.1} parent=15 // pred_check
        %p421 = pneg %p94
      $region26: #{tcn_moco_pretrain_forward.1} parent=15 // pred_check_branch
        %423 = sbr.rel (%p421) target = $region28
      $region27: #{tcn_moco_pretrain_forward.1} parent=15 // pred_region
        %p424 = scmp.lt.s32.totalorder %s22, 1
        %s425 = scalar_select %p424, %s22, 1
        %s426 = smul.addr %s425, 2
        %s427 = scalar_lea.vmem %s3, %s426
      $region28: #{tcn_moco_pretrain_forward.1} parent=15 // pred_fallthru
        _
      // Predicated region
      $region29: #{tcn_moco_pretrain_forward.1} parent=15 // pred_check
        %p428 = pneg %p120
      $region30: #{tcn_moco_pretrain_forward.1} parent=15 // pred_check_branch
        %430 = sbr.rel (%p428) target = $region32
      $region31: #{tcn_moco_pretrain_forward.1} parent=15 // pred_region
        %p431 = scmp.lt.s32.totalorder %s22, 1
        %s432 = scalar_select %p431, %s22, 1
        %s433 = scalar_lea.vmem %s4, %s432
      $region32: #{tcn_moco_pretrain_forward.1} parent=15 // pred_fallthru
        _
      // Predicated region
      $region33: #{tcn_moco_pretrain_forward.1} parent=15 // pred_check
        %p434 = pneg %p146
      $region34: #{tcn_moco_pretrain_forward.1} parent=15 // pred_check_branch
        %436 = sbr.rel (%p434) target = $region36
      $region35: #{tcn_moco_pretrain_forward.1} parent=15 // pred_region
        %p437 = scmp.lt.s32.totalorder %s22, 1
        %s438 = scalar_select %p437, %s22, 1
        %s439 = smul.addr %s438, 96
        %s440 = smul.addr %s439, 4
        %s441 = scalar_lea.vmem %s5, %s440
      $region36: #{tcn_moco_pretrain_forward.1} parent=15 // pred_fallthru
        _
      // Predicated region
      $region37: #{tcn_moco_pretrain_forward.1} parent=15 // pred_check
        %p442 = pneg %p172
      $region38: #{tcn_moco_pretrain_forward.1} parent=15 // pred_check_branch
        %444 = sbr.rel (%p442) target = $region40
      $region39: #{tcn_moco_pretrain_forward.1} parent=15 // pred_region
        %p445 = scmp.lt.s32.totalorder %s22, 1
        %s446 = scalar_select %p445, %s22, 1
        %s447 = smul.addr %s446, 6
        %s448 = scalar_lea.vmem %s6, %s447
      $region40: #{tcn_moco_pretrain_forward.1} parent=15 // pred_fallthru
        _
      // Predicated region
      $region41: #{tcn_moco_pretrain_forward.1} parent=15 // pred_check
        %p449 = pneg %p198
      $region42: #{tcn_moco_pretrain_forward.1} parent=15 // pred_check_branch
        %451 = sbr.rel (%p449) target = $region44
      $region43: #{tcn_moco_pretrain_forward.1} parent=15 // pred_region
        %p452 = scmp.lt.s32.totalorder %s22, 1
        %s453 = scalar_select %p452, %s22, 1
        %s454 = smul.addr %s453, 16
        %s455 = smul.addr %s454, 4
        %s456 = scalar_lea.vmem %s7, %s455
      $region44: #{tcn_moco_pretrain_forward.1} parent=15 // pred_fallthru
        _
      // Predicated region
      $region45: #{tcn_moco_pretrain_forward.1} parent=15 // pred_check
        %p457 = pneg %p224
      $region46: #{tcn_moco_pretrain_forward.1} parent=15 // pred_check_branch
        %459 = sbr.rel (%p457) target = $region48
      $region47: #{tcn_moco_pretrain_forward.1} parent=15 // pred_region
        %p460 = scmp.lt.s32.totalorder %s22, 1
        %s461 = scalar_select %p460, %s22, 1
        %s462 = scalar_lea.vmem %s8, %s461
      $region48: #{tcn_moco_pretrain_forward.1} parent=15 // pred_fallthru
        _
      // Predicated region
      $region49: #{tcn_moco_pretrain_forward.1} parent=15 // pred_check
        %p463 = pneg %p250
      $region50: #{tcn_moco_pretrain_forward.1} parent=15 // pred_check_branch
        %465 = sbr.rel (%p463) target = $region52
      $region51: #{tcn_moco_pretrain_forward.1} parent=15 // pred_region
        %p466 = scmp.lt.s32.totalorder %s22, 1
        %s467 = scalar_select %p466, %s22, 1
        %s468 = smul.addr %s467, 16
        %s469 = smul.addr %s468, 4
        %s470 = scalar_lea.vmem %s9, %s469
      $region52: #{tcn_moco_pretrain_forward.1} parent=15 // pred_fallthru
        _
      // Predicated region
      $region53: #{tcn_moco_pretrain_forward.1} parent=15 // pred_check
        %p471 = pneg %p276
      $region54: #{tcn_moco_pretrain_forward.1} parent=15 // pred_check_branch
        %473 = sbr.rel (%p471) target = $region56
      $region55: #{tcn_moco_pretrain_forward.1} parent=15 // pred_region
        %p474 = scmp.lt.s32.totalorder %s22, 1
        %s475 = scalar_select %p474, %s22, 1
        %s476 = scalar_lea.vmem %s10, %s475
      $region56: #{tcn_moco_pretrain_forward.1} parent=15 // pred_fallthru
        _
      // Predicated region
      $region57: #{tcn_moco_pretrain_forward.1} parent=15 // pred_check
        %p477 = pneg %p302
      $region58: #{tcn_moco_pretrain_forward.1} parent=15 // pred_check_branch
        %479 = sbr.rel (%p477) target = $region60
      $region59: #{tcn_moco_pretrain_forward.1} parent=15 // pred_region
        %p480 = scmp.lt.s32.totalorder %s22, 1
        %s481 = scalar_select %p480, %s22, 1
        %s482 = smul.addr %s481, 16
        %s483 = smul.addr %s482, 4
        %s484 = scalar_lea.vmem %s11, %s483
      $region60: #{tcn_moco_pretrain_forward.1} parent=15 // pred_fallthru
        _
      // Predicated region
      $region61: #{tcn_moco_pretrain_forward.1} parent=15 // pred_check
        %p485 = pneg %p328
      $region62: #{tcn_moco_pretrain_forward.1} parent=15 // pred_check_branch
        %487 = sbr.rel (%p485) target = $region64
      $region63: #{tcn_moco_pretrain_forward.1} parent=15 // pred_region
        %p488 = scmp.lt.s32.totalorder %s22, 1
        %s489 = scalar_select %p488, %s22, 1
        %s490 = scalar_lea.vmem %s12, %s489
      $region64: #{tcn_moco_pretrain_forward.1} parent=15 // pred_fallthru
        _
    $region16: #{tcn_moco_pretrain_forward.1} parent=5 // pred_fallthru
      _
    %p491 = scmp.le.s32.totalorder 1, %s22
    %p492 = scmp.lt.s32.totalorder %s22, 3
    %p493 = pnand %p491, %p492
    %p494 = pneg %p493
    // Predicated region
    $region65: #{tcn_moco_pretrain_forward.1} parent=5 // pred_check
      _
    $region66: #{tcn_moco_pretrain_forward.1} parent=5 // pred_check_branch
      %496 = sbr.rel (%p493) target = $region68
    $region67: #{tcn_moco_pretrain_forward.1} parent=5 // pred_region
      %s497 = ssub.s32 %s22, 1
      %p498 = scmp.lt.s32.totalorder %s27, 1
      %s499 = scalar_select %p498, %s27, 1
      %s500 = smul.addr %s499, 2
      %s501 = smul.addr %s500, 8
      %s502 = scalar_lea.vmem %s1, %s501
      %p503 = pneg %p48
      %p504 = pneg %p45
      %p505 = scmp.lt.s32.totalorder %s27, 1
      %s506 = scalar_select %p505, %s27, 1
      %s507 = smul.addr %s506, 2
      %s508 = smul.addr %s507, 8
      %s509 = scalar_lea.vmem %s2, %s508
      %p510 = pneg %p74
      %p511 = pneg %p71
      %p512 = scmp.lt.s32.totalorder %s27, 1
      %s513 = scalar_select %p512, %s27, 1
      %s514 = smul.addr %s513, 2
      %s515 = scalar_lea.vmem %s3, %s514
      %p516 = pneg %p100
      %p517 = pneg %p97
      %p518 = scmp.lt.s32.totalorder %s27, 1
      %s519 = scalar_select %p518, %s27, 1
      %s520 = scalar_lea.vmem %s4, %s519
      %p521 = pneg %p126
      %p522 = pneg %p123
      %p523 = scmp.lt.s32.totalorder %s27, 1
      %s524 = scalar_select %p523, %s27, 1
      %s525 = smul.addr %s524, 96
      %s526 = smul.addr %s525, 4
      %s527 = scalar_lea.vmem %s5, %s526
      %p528 = pneg %p152
      %p529 = pneg %p149
      %p530 = scmp.lt.s32.totalorder %s27, 1
      %s531 = scalar_select %p530, %s27, 1
      %s532 = smul.addr %s531, 6
      %s533 = scalar_lea.vmem %s6, %s532
      %p534 = pneg %p178
      %p535 = pneg %p175
      %p536 = scmp.lt.s32.totalorder %s27, 1
      %s537 = scalar_select %p536, %s27, 1
      %s538 = smul.addr %s537, 16
      %s539 = smul.addr %s538, 4
      %s540 = scalar_lea.vmem %s7, %s539
      %p541 = pneg %p204
      %p542 = pneg %p201
      %p543 = scmp.lt.s32.totalorder %s27, 1
      %s544 = scalar_select %p543, %s27, 1
      %s545 = scalar_lea.vmem %s8, %s544
      %p546 = pneg %p230
      %p547 = pneg %p227
      %p548 = scmp.lt.s32.totalorder %s27, 1
      %s549 = scalar_select %p548, %s27, 1
      %s550 = smul.addr %s549, 16
      %s551 = smul.addr %s550, 4
      %s552 = scalar_lea.vmem %s9, %s551
      %p553 = pneg %p256
      %p554 = pneg %p253
      %p555 = scmp.lt.s32.totalorder %s27, 1
      %s556 = scalar_select %p555, %s27, 1
      %s557 = scalar_lea.vmem %s10, %s556
      %p558 = pneg %p282
      %p559 = pneg %p279
      %p560 = scmp.lt.s32.totalorder %s27, 1
      %s561 = scalar_select %p560, %s27, 1
      %s562 = smul.addr %s561, 16
      %s563 = smul.addr %s562, 4
      %s564 = scalar_lea.vmem %s11, %s563
      %p565 = pneg %p308
      %p566 = pneg %p305
      %p567 = scmp.lt.s32.totalorder %s27, 1
      %s568 = scalar_select %p567, %s27, 1
      %s569 = scalar_lea.vmem %s12, %s568
      %p570 = pneg %p334
      %p571 = pneg %p331
      %p572 = pneg %p360
      %p573 = pneg %p357
      %p574 = scmp.lt.s32.totalorder %s27, 1
      %s575 = scalar_select %p574, %s27, 1
      %s576 = smul.addr %s575, 2
      %s577 = smul.addr %s576, 8
      %s578 = scalar_lea.vmem %s13, %s577
      %p579 = pneg %p386
      %p580 = pneg %p383
      %p581 = scmp.lt.s32.totalorder %s27, 1
      %s582 = scalar_select %p581, %s27, 1
      %s583 = smul.addr %s582, 2
      %s584 = scalar_lea.vmem %s14, %s583
      %p585 = scmp.lt.s32.totalorder %s27, 1
      %s586 = scalar_select %p585, %s27, 1
      %s587 = smul.addr %s586, 2
      %s588 = smul.addr %s587, 8
      %s589 = scalar_lea.vmem %s1, %s588
      %p590 = scmp.lt.s32.totalorder %s27, 1
      %s591 = scalar_select %p590, %s27, 1
      %s592 = smul.addr %s591, 2
      %s593 = smul.addr %s592, 8
      %s594 = scalar_lea.vmem %s2, %s593
      %p595 = scmp.lt.s32.totalorder %s27, 1
      %s596 = scalar_select %p595, %s27, 1
      %s597 = smul.addr %s596, 2
      %s598 = scalar_lea.vmem %s3, %s597
      %p599 = scmp.lt.s32.totalorder %s27, 1
      %s600 = scalar_select %p599, %s27, 1
      %s601 = scalar_lea.vmem %s4, %s600
      %p602 = scmp.lt.s32.totalorder %s27, 1
      %s603 = scalar_select %p602, %s27, 1
      %s604 = smul.addr %s603, 96
      %s605 = smul.addr %s604, 4
      %s606 = scalar_lea.vmem %s5, %s605
      %p607 = scmp.lt.s32.totalorder %s27, 1
      %s608 = scalar_select %p607, %s27, 1
      %s609 = smul.addr %s608, 6
      %s610 = scalar_lea.vmem %s6, %s609
      %p611 = scmp.lt.s32.totalorder %s27, 1
      %s612 = scalar_select %p611, %s27, 1
      %s613 = smul.addr %s612, 16
      %s614 = smul.addr %s613, 4
      %s615 = scalar_lea.vmem %s7, %s614
      %p616 = scmp.lt.s32.totalorder %s27, 1
      %s617 = scalar_select %p616, %s27, 1
      %s618 = scalar_lea.vmem %s8, %s617
      %p619 = scmp.lt.s32.totalorder %s27, 1
      %s620 = scalar_select %p619, %s27, 1
      %s621 = smul.addr %s620, 16
      %s622 = smul.addr %s621, 4
      %s623 = scalar_lea.vmem %s9, %s622
      %p624 = scmp.lt.s32.totalorder %s27, 1
      %s625 = scalar_select %p624, %s27, 1
      %s626 = scalar_lea.vmem %s10, %s625
      %p627 = scmp.lt.s32.totalorder %s27, 1
      %s628 = scalar_select %p627, %s27, 1
      %s629 = smul.addr %s628, 16
      %s630 = smul.addr %s629, 4
      %s631 = scalar_lea.vmem %s11, %s630
      %p632 = scmp.lt.s32.totalorder %s27, 1
      %s633 = scalar_select %p632, %s27, 1
      %s634 = scalar_lea.vmem %s12, %s633
      %p635 = scmp.lt.s32.totalorder %s27, 1
      %s636 = scalar_select %p635, %s27, 1
      %s637 = smul.addr %s636, 2
      %s638 = smul.addr %s637, 8
      %s639 = scalar_lea.vmem %s13, %s638
      %p640 = scmp.lt.s32.totalorder %s27, 1
      %s641 = scalar_select %p640, %s27, 1
      %s642 = smul.addr %s641, 2
      %s643 = scalar_lea.vmem %s14, %s642
      %v645 = vld [vmem:[%s589] sm:$0xff]
      %v646 = vld [vmem:[%s589 + $0x8] sm:$0xff]
      %vm647 = vcmp.ne.f32.partialorder %v645, %v645
      %vm648 = vcmp.ne.f32.partialorder %v646, %v646
      %v649 = vsel %vm647, 1.0, 0.0
      %v650 = vsel %vm648, 1.0, 0.0
      %vm651 = vcmask 31744
      %v652 = vsel %vm651, %v649, -inf
      %653 = vmax.xlane.f32.xlu0 %v652
      %v654 = vpop.xlane.xlu0 %653
      %v655 = vsel %vm651, %v650, -inf
      %656 = vmax.xlane.f32.xlu0 %v655
      %v657 = vpop.xlane.xlu0 %656
      %vm658 = vcmp.lt.f32.partialorder %v654, 0.5
      %vm659 = vcmp.lt.f32.partialorder %v657, 0.5
      %v660 = vsel %vm658, 1, 0
      %v661 = vsel %vm659, 1, 0
      %vm662 = vcmp.eq.s32.totalorder %v660, 1
      %vm663 = vcmp.eq.s32.totalorder %v661, 1
      %v664 = vsel %vm662, %v645, 0.0
      %v665 = vsel %vm663, %v646, 0.0
      %v666 = vpack.c.bf16 %v664, %v664
      %v667 = vpack.c.bf16 %v665, %v665
      %v668 = vld [vmem:[%s598] sm:$0x3]
      %v669 = vld [vmem:[%s601] sm:$0x1]
      %v671 = vlaneseq
      %v672 = vshrl.u32 %v671, 7
      %v673 = vsub.s32 0, %v672
      %v674 = vrot.slane %v669, %v673
      %v678 = vunpack.c.l.b16 %v666
      %v679 = vunpack.c.l.b16 %v667
      %v680 = vpack.c.b16 %v679, %v678
      %v682 = vsel %vm651, %v680, 0
      %vm684 = vcmask 1041408
      %v686 = vsel %vm684, %v668, 0
      %688 = vmatprep.subr.bf16.mxu0 0
      %689 = vmatpush1.bf16.msra.mxu0 0
      %690 = vmatprep.subr.bf16.mxu0 0
      %691 = vmatpush1.bf16.msra.mxu0 0
      %692 = vmatprep.subr.bf16.mxu0 0
      %693 = vmatpush1.bf16.msra.mxu0 0
      %694 = vmatprep.subr.bf16.mxu0 0
      %695 = vmatpush1.bf16.msra.mxu0 0
      %696 = vmatprep.subr.bf16.mxu0 0
      %697 = vmatpush1.bf16.msra.mxu0 0
      %698 = vmatprep.subr.bf16.mxu0 0
      %699 = vmatpush1.bf16.msra.mxu0 0
      %700 = vmatprep.subr.bf16.mxu0 0
      %701 = vmatpush1.bf16.msra.mxu0 0
      %702 = vmatprep.subr.bf16.mxu0 0
      %703 = vmatpush1.bf16.msra.mxu0 %v686
      %704 = vmatprep.subr.bf16.mxu0 0
      %705 = vmatpush2.bf16.msra.mxu0 0
      %706 = vmatprep.subr.bf16.mxu0 0
      %707 = vmatpush2.bf16.msra.mxu0 0
      %708 = vmatprep.subr.bf16.mxu0 0
      %709 = vmatpush2.bf16.msra.mxu0 0
      %710 = vmatprep.subr.bf16.mxu0 0
      %711 = vmatpush2.bf16.msra.mxu0 0
      %712 = vmatprep.subr.bf16.mxu0 0
      %713 = vmatpush2.bf16.msra.mxu0 0
      %714 = vmatprep.subr.bf16.mxu0 0
      %715 = vmatpush2.bf16.msra.mxu0 0
      %716 = vmatprep.subr.bf16.mxu0 0
      %717 = vmatpush2.bf16.msra.mxu0 0
      %718 = vmatprep.subr.bf16.mxu0 0
      %719 = vmatpush2.bf16.msra.mxu0 0
      %720 = vmatprep.mubr.bf16.mxu0 0
      %721 = vmatmul.mubr.bf16.gmra.mxu0 %v682
      %v722 = vpop.f32.mrf.mxu0
      %v723 = vadd.f32 %v674, %v722
      %v724 = vpop.f32.mrf.mxu0
      %v725 = vpop.f32.mrf.mxu0
      %v726 = vadd.f32 %v674, %v725
      %v727 = vpop.f32.mrf.mxu0
      %728 = vdwg.mxu0
      %v729 = vld [vmem:[%s594] sm:$0xff]
      %v730 = vld [vmem:[%s594 + $0x8] sm:$0xff]
      %vm731 = vcmp.gt.f32.partialorder %v729, 0.5
      %vm732 = vcmp.gt.f32.partialorder %v730, 0.5
      %vm733 = vmand %vm731, %vm658
      %vm734 = vmand %vm732, %vm659
      %v735 = vsel %vm733, 1, 0
      %v736 = vsel %vm734, 1, 0
      %737 = vset.pattern.permute.xlu0 0
      %738 = vperm.xlu0 %737, %v735
      %v739 = vpop.permute.xlu0 %738
      %740 = vset.pattern.permute.xlu0 0
      %741 = vperm.xlu0 %740, %v736
      %v742 = vpop.permute.xlu0 %741
      %vm743 = vcmp.eq.s32.totalorder %v739, 1
      %vm744 = vcmp.eq.s32.totalorder %v742, 1
      %v745 = vsel %vm743, %v723, 0.0
      %v746 = vsel %vm744, %v726, 0.0
      %v749 = vrot.slane %v745, 6
      %v750 = vrot.slane %v746, 6
      %v753 = vsel %vm684, 0.0, %v749
      %v754 = vsel %vm684, 0.0, %v750
      %v755 = vrot.slane %v745, 7
      %v756 = vrot.slane %v746, 7
      %vm759 = vcmask 1040384
      %v760 = vsel %vm759, 0.0, %v755
      %v761 = vsel %vm759, 0.0, %v756
      %764 = vrot.lane.b32.xlu0 %v760, 32
      %v765 = vpop.permute.xlu0 %764
      %766 = vrot.lane.b32.xlu0 %v761, 32
      %v767 = vpop.permute.xlu0 %766
      %770 = vrot.lane.b32.xlu0 %v745, 64
      %v771 = vpop.permute.xlu0 %770
      %772 = vrot.lane.b32.xlu0 %v746, 64
      %v773 = vpop.permute.xlu0 %772
      %vm776 = vcmask 261120
      %v777 = vsel %vm776, %v753, %v765
      %v778 = vsel %vm776, %v754, %v767
      %vm779 = vcmask 523264
      %v780 = vsel %vm779, %v777, %v771
      %v781 = vsel %vm779, %v778, %v773
      %vm782 = vcmask 785408
      %v783 = vsel %vm782, %v780, 0.0
      %v784 = vsel %vm782, %v781, 0.0
      %v785 = vpack.c.bf16 %v783, %v783
      %v786 = vpack.c.bf16 %v784, %v784
      %v787 = vld [vmem:[%s606] sm:$0xf]
      %v788 = vld [vmem:[%s606 + $0x4] sm:$0xf]
      %v789 = vld [vmem:[%s606 + $0x8] sm:$0xf]
      %v790 = vld [vmem:[%s606 + $0xc] sm:$0xf]
      %v791 = vld [vmem:[%s606 + $0x10] sm:$0xf]
      %v792 = vld [vmem:[%s606 + $0x14] sm:$0xf]
      %v793 = vld [vmem:[%s606 + $0x18] sm:$0xf]
      %v794 = vld [vmem:[%s606 + $0x1c] sm:$0xf]
      %v795 = vld [vmem:[%s606 + $0x20] sm:$0xf]
      %v796 = vld [vmem:[%s606 + $0x24] sm:$0xf]
      %v797 = vld [vmem:[%s606 + $0x28] sm:$0xf]
      %v798 = vld [vmem:[%s606 + $0x2c] sm:$0xf]
      %v799 = vld [vmem:[%s606 + $0x30] sm:$0xf]
      %v800 = vld [vmem:[%s606 + $0x34] sm:$0xf]
      %v801 = vld [vmem:[%s606 + $0x38] sm:$0xf]
      %v802 = vld [vmem:[%s606 + $0x3c] sm:$0xf]
      %v803 = vld [vmem:[%s610] sm:$0x1]
      %v805 = vlaneseq
      %v806 = vshrl.u32 %v805, 7
      %v807 = vsub.s32 0, %v806
      %v808 = vrot.slane %v803, %v807
      %v812 = vunpack.c.l.b16 %v785
      %v813 = vunpack.c.l.b16 %v786
      %v814 = vpack.c.b16 %v813, %v812
      %v832 = vunpack.c.l.b16 %v787
      %v833 = vunpack.c.l.b16 %v788
      %v834 = vunpack.c.l.b16 %v789
      %v835 = vunpack.c.l.b16 %v790
      %v836 = vunpack.c.l.b16 %v791
      %v837 = vunpack.c.l.b16 %v792
      %v838 = vunpack.c.l.b16 %v793
      %v839 = vunpack.c.l.b16 %v794
      %v840 = vunpack.c.l.b16 %v795
      %v841 = vunpack.c.l.b16 %v796
      %v842 = vunpack.c.l.b16 %v797
      %v843 = vunpack.c.l.b16 %v798
      %v844 = vunpack.c.l.b16 %v799
      %v845 = vunpack.c.l.b16 %v800
      %v846 = vunpack.c.l.b16 %v801
      %v847 = vunpack.c.l.b16 %v802
      %v848 = vpack.c.b16 %v833, %v832
      %v849 = vpack.c.b16 %v835, %v834
      %v850 = vpack.c.b16 %v837, %v836
      %v851 = vpack.c.b16 %v839, %v838
      %v852 = vpack.c.b16 %v841, %v840
      %v853 = vpack.c.b16 %v843, %v842
      %v854 = vpack.c.b16 %v845, %v844
      %v855 = vpack.c.b16 %v847, %v846
      %864 = vmatprep.subr.bf16.mxu0 0
      %865 = vmatpush1.bf16.msra.mxu0 %v855
      %866 = vmatprep.subr.bf16.mxu0 0
      %867 = vmatpush1.bf16.msra.mxu0 %v854
      %868 = vmatprep.subr.bf16.mxu0 0
      %869 = vmatpush1.bf16.msra.mxu0 %v853
      %870 = vmatprep.subr.bf16.mxu0 0
      %871 = vmatpush1.bf16.msra.mxu0 %v852
      %872 = vmatprep.subr.bf16.mxu0 0
      %873 = vmatpush1.bf16.msra.mxu0 %v851
      %874 = vmatprep.subr.bf16.mxu0 0
      %875 = vmatpush1.bf16.msra.mxu0 %v850
      %876 = vmatprep.subr.bf16.mxu0 0
      %877 = vmatpush1.bf16.msra.mxu0 %v849
      %878 = vmatprep.subr.bf16.mxu0 0
      %879 = vmatpush1.bf16.msra.mxu0 %v848
      %880 = vmatprep.subr.bf16.mxu0 0
      %881 = vmatpush2.bf16.msra.mxu0 0
      %882 = vmatprep.subr.bf16.mxu0 0
      %883 = vmatpush2.bf16.msra.mxu0 0
      %884 = vmatprep.subr.bf16.mxu0 0
      %885 = vmatpush2.bf16.msra.mxu0 0
      %886 = vmatprep.subr.bf16.mxu0 0
      %887 = vmatpush2.bf16.msra.mxu0 0
      %888 = vmatprep.subr.bf16.mxu0 0
      %889 = vmatpush2.bf16.msra.mxu0 0
      %890 = vmatprep.subr.bf16.mxu0 0
      %891 = vmatpush2.bf16.msra.mxu0 0
      %892 = vmatprep.subr.bf16.mxu0 0
      %893 = vmatpush2.bf16.msra.mxu0 0
      %894 = vmatprep.subr.bf16.mxu0 0
      %895 = vmatpush2.bf16.msra.mxu0 0
      %896 = vmatprep.mubr.bf16.mxu0 0
      %897 = vmatmul.mubr.bf16.gmra.mxu0 %v814
      %v898 = vpop.f32.mrf.mxu0
      %v899 = vadd.f32 %v808, %v898
      %v900 = vpop.f32.mrf.mxu0
      %v901 = vpop.f32.mrf.mxu0
      %v902 = vadd.f32 %v808, %v901
      %v903 = vpop.f32.mrf.mxu0
      %904 = vdwg.mxu0
      %v905 = vmax.f32 %v899, 0.0
      %v906 = vmax.f32 %v902, 0.0
      %v909 = vrot.slane %v905, 6
      %v910 = vrot.slane %v906, 6
      %v913 = vsel %vm684, 0.0, %v909
      %v914 = vsel %vm684, 0.0, %v910
      %v915 = vrot.slane %v905, 7
      %v916 = vrot.slane %v906, 7
      %v919 = vsel %vm759, 0.0, %v915
      %v920 = vsel %vm759, 0.0, %v916
      %923 = vrot.lane.b32.xlu0 %v919, 32
      %v924 = vpop.permute.xlu0 %923
      %925 = vrot.lane.b32.xlu0 %v920, 32
      %v926 = vpop.permute.xlu0 %925
      %929 = vrot.lane.b32.xlu0 %v905, 64
      %v930 = vpop.permute.xlu0 %929
      %931 = vrot.lane.b32.xlu0 %v906, 64
      %v932 = vpop.permute.xlu0 %931
      %v935 = vsel %vm776, %v913, %v924
      %v936 = vsel %vm776, %v914, %v926
      %v937 = vsel %vm779, %v935, %v930
      %v938 = vsel %vm779, %v936, %v932
      %v939 = vsel %vm782, %v937, 0.0
      %v940 = vsel %vm782, %v938, 0.0
      %v941 = vpack.c.bf16 %v939, %v939
      %v942 = vpack.c.bf16 %v940, %v940
      %s943 = scalar_lea.vmem %s606, 64
      %v944 = vld [vmem:[%s943] sm:$0xf]
      %v945 = vld [vmem:[%s943 + $0x4] sm:$0xf]
      %v946 = vld [vmem:[%s943 + $0x8] sm:$0xf]
      %v947 = vld [vmem:[%s943 + $0xc] sm:$0xf]
      %v948 = vld [vmem:[%s943 + $0x10] sm:$0xf]
      %v949 = vld [vmem:[%s943 + $0x14] sm:$0xf]
      %v950 = vld [vmem:[%s943 + $0x18] sm:$0xf]
      %v951 = vld [vmem:[%s943 + $0x1c] sm:$0xf]
      %v952 = vld [vmem:[%s943 + $0x20] sm:$0xf]
      %v953 = vld [vmem:[%s943 + $0x24] sm:$0xf]
      %v954 = vld [vmem:[%s943 + $0x28] sm:$0xf]
      %v955 = vld [vmem:[%s943 + $0x2c] sm:$0xf]
      %v956 = vld [vmem:[%s943 + $0x30] sm:$0xf]
      %v957 = vld [vmem:[%s943 + $0x34] sm:$0xf]
      %v958 = vld [vmem:[%s943 + $0x38] sm:$0xf]
      %v959 = vld [vmem:[%s943 + $0x3c] sm:$0xf]
      %s960 = scalar_lea.vmem %s610, 1
      %v961 = vld [vmem:[%s960] sm:$0x1]
      %v963 = vlaneseq
      %v964 = vshrl.u32 %v963, 7
      %v965 = vsub.s32 0, %v964
      %v966 = vrot.slane %v961, %v965
      %v970 = vunpack.c.l.b16 %v941
      %v971 = vunpack.c.l.b16 %v942
      %v972 = vpack.c.b16 %v971, %v970
      %v990 = vunpack.c.l.b16 %v944
      %v991 = vunpack.c.l.b16 %v945
      %v992 = vunpack.c.l.b16 %v946
      %v993 = vunpack.c.l.b16 %v947
      %v994 = vunpack.c.l.b16 %v948
      %v995 = vunpack.c.l.b16 %v949
      %v996 = vunpack.c.l.b16 %v950
      %v997 = vunpack.c.l.b16 %v951
      %v998 = vunpack.c.l.b16 %v952
      %v999 = vunpack.c.l.b16 %v953
      %v1000 = vunpack.c.l.b16 %v954
      %v1001 = vunpack.c.l.b16 %v955
      %v1002 = vunpack.c.l.b16 %v956
      %v1003 = vunpack.c.l.b16 %v957
      %v1004 = vunpack.c.l.b16 %v958
      %v1005 = vunpack.c.l.b16 %v959
      %v1006 = vpack.c.b16 %v991, %v990
      %v1007 = vpack.c.b16 %v993, %v992
      %v1008 = vpack.c.b16 %v995, %v994
      %v1009 = vpack.c.b16 %v997, %v996
      %v1010 = vpack.c.b16 %v999, %v998
      %v1011 = vpack.c.b16 %v1001, %v1000
      %v1012 = vpack.c.b16 %v1003, %v1002
      %v1013 = vpack.c.b16 %v1005, %v1004
      %1022 = vmatprep.subr.bf16.mxu0 0
      %1023 = vmatpush1.bf16.msra.mxu0 %v1013
      %1024 = vmatprep.subr.bf16.mxu0 0
      %1025 = vmatpush1.bf16.msra.mxu0 %v1012
      %1026 = vmatprep.subr.bf16.mxu0 0
      %1027 = vmatpush1.bf16.msra.mxu0 %v1011
      %1028 = vmatprep.subr.bf16.mxu0 0
      %1029 = vmatpush1.bf16.msra.mxu0 %v1010
      %1030 = vmatprep.subr.bf16.mxu0 0
      %1031 = vmatpush1.bf16.msra.mxu0 %v1009
      %1032 = vmatprep.subr.bf16.mxu0 0
      %1033 = vmatpush1.bf16.msra.mxu0 %v1008
      %1034 = vmatprep.subr.bf16.mxu0 0
      %1035 = vmatpush1.bf16.msra.mxu0 %v1007
      %1036 = vmatprep.subr.bf16.mxu0 0
      %1037 = vmatpush1.bf16.msra.mxu0 %v1006
      %1038 = vmatprep.subr.bf16.mxu0 0
      %1039 = vmatpush2.bf16.msra.mxu0 0
      %1040 = vmatprep.subr.bf16.mxu0 0
      %1041 = vmatpush2.bf16.msra.mxu0 0
      %1042 = vmatprep.subr.bf16.mxu0 0
      %1043 = vmatpush2.bf16.msra.mxu0 0
      %1044 = vmatprep.subr.bf16.mxu0 0
      %1045 = vmatpush2.bf16.msra.mxu0 0
      %1046 = vmatprep.subr.bf16.mxu0 0
      %1047 = vmatpush2.bf16.msra.mxu0 0
      %1048 = vmatprep.subr.bf16.mxu0 0
      %1049 = vmatpush2.bf16.msra.mxu0 0
      %1050 = vmatprep.subr.bf16.mxu0 0
      %1051 = vmatpush2.bf16.msra.mxu0 0
      %1052 = vmatprep.subr.bf16.mxu0 0
      %1053 = vmatpush2.bf16.msra.mxu0 0
      %1054 = vmatprep.mubr.bf16.mxu0 0
      %1055 = vmatmul.mubr.bf16.gmra.mxu0 %v972
      %v1056 = vpop.f32.mrf.mxu0
      %v1057 = vadd.f32 %v966, %v1056
      %v1058 = vpop.f32.mrf.mxu0
      %v1059 = vpop.f32.mrf.mxu0
      %v1060 = vadd.f32 %v966, %v1059
      %v1061 = vpop.f32.mrf.mxu0
      %1062 = vdwg.mxu0
      %v1063 = vmax.f32 %v1057, 0.0
      %v1064 = vmax.f32 %v1060, 0.0
      %v1065 = vadd.f32 %v1063, %v745
      %v1066 = vadd.f32 %v1064, %v746
      %v1067 = vmax.f32 %v1065, 0.0
      %v1068 = vmax.f32 %v1066, 0.0
      %v1071 = vrot.slane %v1067, 4
      %v1072 = vrot.slane %v1068, 4
      %vm1075 = vcmask 1043456
      %v1076 = vsel %vm1075, 0.0, %v1071
      %v1077 = vsel %vm1075, 0.0, %v1072
      %v1078 = vrot.slane %v1067, 6
      %v1079 = vrot.slane %v1068, 6
      %v1082 = vsel %vm684, 0.0, %v1078
      %v1083 = vsel %vm684, 0.0, %v1079
      %1086 = vrot.lane.b32.xlu0 %v1082, 32
      %v1087 = vpop.permute.xlu0 %1086
      %1088 = vrot.lane.b32.xlu0 %v1083, 32
      %v1089 = vpop.permute.xlu0 %1088
      %1092 = vrot.lane.b32.xlu0 %v1067, 64
      %v1093 = vpop.permute.xlu0 %1092
      %1094 = vrot.lane.b32.xlu0 %v1068, 64
      %v1095 = vpop.permute.xlu0 %1094
      %v1098 = vsel %vm776, %v1076, %v1087
      %v1099 = vsel %vm776, %v1077, %v1089
      %v1100 = vsel %vm779, %v1098, %v1093
      %v1101 = vsel %vm779, %v1099, %v1095
      %v1102 = vsel %vm782, %v1100, 0.0
      %v1103 = vsel %vm782, %v1101, 0.0
      %v1104 = vpack.c.bf16 %v1102, %v1102
      %v1105 = vpack.c.bf16 %v1103, %v1103
      %s1106 = scalar_lea.vmem %s606, 128
      %v1107 = vld [vmem:[%s1106] sm:$0xf]
      %v1108 = vld [vmem:[%s1106 + $0x4] sm:$0xf]
      %v1109 = vld [vmem:[%s1106 + $0x8] sm:$0xf]
      %v1110 = vld [vmem:[%s1106 + $0xc] sm:$0xf]
      %v1111 = vld [vmem:[%s1106 + $0x10] sm:$0xf]
      %v1112 = vld [vmem:[%s1106 + $0x14] sm:$0xf]
      %v1113 = vld [vmem:[%s1106 + $0x18] sm:$0xf]
      %v1114 = vld [vmem:[%s1106 + $0x1c] sm:$0xf]
      %v1115 = vld [vmem:[%s1106 + $0x20] sm:$0xf]
      %v1116 = vld [vmem:[%s1106 + $0x24] sm:$0xf]
      %v1117 = vld [vmem:[%s1106 + $0x28] sm:$0xf]
      %v1118 = vld [vmem:[%s1106 + $0x2c] sm:$0xf]
      %v1119 = vld [vmem:[%s1106 + $0x30] sm:$0xf]
      %v1120 = vld [vmem:[%s1106 + $0x34] sm:$0xf]
      %v1121 = vld [vmem:[%s1106 + $0x38] sm:$0xf]
      %v1122 = vld [vmem:[%s1106 + $0x3c] sm:$0xf]
      %s1123 = scalar_lea.vmem %s610, 2
      %v1124 = vld [vmem:[%s1123] sm:$0x1]
      %v1126 = vlaneseq
      %v1127 = vshrl.u32 %v1126, 7
      %v1128 = vsub.s32 0, %v1127
      %v1129 = vrot.slane %v1124, %v1128
      %v1133 = vunpack.c.l.b16 %v1104
      %v1134 = vunpack.c.l.b16 %v1105
      %v1135 = vpack.c.b16 %v1134, %v1133
      %v1153 = vunpack.c.l.b16 %v1107
      %v1154 = vunpack.c.l.b16 %v1108
      %v1155 = vunpack.c.l.b16 %v1109
      %v1156 = vunpack.c.l.b16 %v1110
      %v1157 = vunpack.c.l.b16 %v1111
      %v1158 = vunpack.c.l.b16 %v1112
      %v1159 = vunpack.c.l.b16 %v1113
      %v1160 = vunpack.c.l.b16 %v1114
      %v1161 = vunpack.c.l.b16 %v1115
      %v1162 = vunpack.c.l.b16 %v1116
      %v1163 = vunpack.c.l.b16 %v1117
      %v1164 = vunpack.c.l.b16 %v1118
      %v1165 = vunpack.c.l.b16 %v1119
      %v1166 = vunpack.c.l.b16 %v1120
      %v1167 = vunpack.c.l.b16 %v1121
      %v1168 = vunpack.c.l.b16 %v1122
      %v1169 = vpack.c.b16 %v1154, %v1153
      %v1170 = vpack.c.b16 %v1156, %v1155
      %v1171 = vpack.c.b16 %v1158, %v1157
      %v1172 = vpack.c.b16 %v1160, %v1159
      %v1173 = vpack.c.b16 %v1162, %v1161
      %v1174 = vpack.c.b16 %v1164, %v1163
      %v1175 = vpack.c.b16 %v1166, %v1165
      %v1176 = vpack.c.b16 %v1168, %v1167
      %1185 = vmatprep.subr.bf16.mxu0 0
      %1186 = vmatpush1.bf16.msra.mxu0 %v1176
      %1187 = vmatprep.subr.bf16.mxu0 0
      %1188 = vmatpush1.bf16.msra.mxu0 %v1175
      %1189 = vmatprep.subr.bf16.mxu0 0
      %1190 = vmatpush1.bf16.msra.mxu0 %v1174
      %1191 = vmatprep.subr.bf16.mxu0 0
      %1192 = vmatpush1.bf16.msra.mxu0 %v1173
      %1193 = vmatprep.subr.bf16.mxu0 0
      %1194 = vmatpush1.bf16.msra.mxu0 %v1172
      %1195 = vmatprep.subr.bf16.mxu0 0
      %1196 = vmatpush1.bf16.msra.mxu0 %v1171
      %1197 = vmatprep.subr.bf16.mxu0 0
      %1198 = vmatpush1.bf16.msra.mxu0 %v1170
      %1199 = vmatprep.subr.bf16.mxu0 0
      %1200 = vmatpush1.bf16.msra.mxu0 %v1169
      %1201 = vmatprep.subr.bf16.mxu0 0
      %1202 = vmatpush2.bf16.msra.mxu0 0
      %1203 = vmatprep.subr.bf16.mxu0 0
      %1204 = vmatpush2.bf16.msra.mxu0 0
      %1205 = vmatprep.subr.bf16.mxu0 0
      %1206 = vmatpush2.bf16.msra.mxu0 0
      %1207 = vmatprep.subr.bf16.mxu0 0
      %1208 = vmatpush2.bf16.msra.mxu0 0
      %1209 = vmatprep.subr.bf16.mxu0 0
      %1210 = vmatpush2.bf16.msra.mxu0 0
      %1211 = vmatprep.subr.bf16.mxu0 0
      %1212 = vmatpush2.bf16.msra.mxu0 0
      %1213 = vmatprep.subr.bf16.mxu0 0
      %1214 = vmatpush2.bf16.msra.mxu0 0
      %1215 = vmatprep.subr.bf16.mxu0 0
      %1216 = vmatpush2.bf16.msra.mxu0 0
      %1217 = vmatprep.mubr.bf16.mxu0 0
      %1218 = vmatmul.mubr.bf16.gmra.mxu0 %v1135
      %v1219 = vpop.f32.mrf.mxu0
      %v1220 = vadd.f32 %v1129, %v1219
      %v1221 = vpop.f32.mrf.mxu0
      %v1222 = vpop.f32.mrf.mxu0
      %v1223 = vadd.f32 %v1129, %v1222
      %v1224 = vpop.f32.mrf.mxu0
      %1225 = vdwg.mxu0
      %v1226 = vmax.f32 %v1220, 0.0
      %v1227 = vmax.f32 %v1223, 0.0
      %v1230 = vrot.slane %v1226, 4
      %v1231 = vrot.slane %v1227, 4
      %v1234 = vsel %vm1075, 0.0, %v1230
      %v1235 = vsel %vm1075, 0.0, %v1231
      %v1236 = vrot.slane %v1226, 6
      %v1237 = vrot.slane %v1227, 6
      %v1240 = vsel %vm684, 0.0, %v1236
      %v1241 = vsel %vm684, 0.0, %v1237
      %1244 = vrot.lane.b32.xlu0 %v1240, 32
      %v1245 = vpop.permute.xlu0 %1244
      %1246 = vrot.lane.b32.xlu0 %v1241, 32
      %v1247 = vpop.permute.xlu0 %1246
      %1250 = vrot.lane.b32.xlu0 %v1226, 64
      %v1251 = vpop.permute.xlu0 %1250
      %1252 = vrot.lane.b32.xlu0 %v1227, 64
      %v1253 = vpop.permute.xlu0 %1252
      %v1256 = vsel %vm776, %v1234, %v1245
      %v1257 = vsel %vm776, %v1235, %v1247
      %v1258 = vsel %vm779, %v1256, %v1251
      %v1259 = vsel %vm779, %v1257, %v1253
      %v1260 = vsel %vm782, %v1258, 0.0
      %v1261 = vsel %vm782, %v1259, 0.0
      %v1262 = vpack.c.bf16 %v1260, %v1260
      %v1263 = vpack.c.bf16 %v1261, %v1261
      %s1264 = scalar_lea.vmem %s606, 192
      %v1265 = vld [vmem:[%s1264] sm:$0xf]
      %v1266 = vld [vmem:[%s1264 + $0x4] sm:$0xf]
      %v1267 = vld [vmem:[%s1264 + $0x8] sm:$0xf]
      %v1268 = vld [vmem:[%s1264 + $0xc] sm:$0xf]
      %v1269 = vld [vmem:[%s1264 + $0x10] sm:$0xf]
      %v1270 = vld [vmem:[%s1264 + $0x14] sm:$0xf]
      %v1271 = vld [vmem:[%s1264 + $0x18] sm:$0xf]
      %v1272 = vld [vmem:[%s1264 + $0x1c] sm:$0xf]
      %v1273 = vld [vmem:[%s1264 + $0x20] sm:$0xf]
      %v1274 = vld [vmem:[%s1264 + $0x24] sm:$0xf]
      %v1275 = vld [vmem:[%s1264 + $0x28] sm:$0xf]
      %v1276 = vld [vmem:[%s1264 + $0x2c] sm:$0xf]
      %v1277 = vld [vmem:[%s1264 + $0x30] sm:$0xf]
      %v1278 = vld [vmem:[%s1264 + $0x34] sm:$0xf]
      %v1279 = vld [vmem:[%s1264 + $0x38] sm:$0xf]
      %v1280 = vld [vmem:[%s1264 + $0x3c] sm:$0xf]
      %s1281 = scalar_lea.vmem %s610, 3
      %v1282 = vld [vmem:[%s1281] sm:$0x1]
      %v1284 = vlaneseq
      %v1285 = vshrl.u32 %v1284, 7
      %v1286 = vsub.s32 0, %v1285
      %v1287 = vrot.slane %v1282, %v1286
      %v1291 = vunpack.c.l.b16 %v1262
      %v1292 = vunpack.c.l.b16 %v1263
      %v1293 = vpack.c.b16 %v1292, %v1291
      %v1311 = vunpack.c.l.b16 %v1265
      %v1312 = vunpack.c.l.b16 %v1266
      %v1313 = vunpack.c.l.b16 %v1267
      %v1314 = vunpack.c.l.b16 %v1268
      %v1315 = vunpack.c.l.b16 %v1269
      %v1316 = vunpack.c.l.b16 %v1270
      %v1317 = vunpack.c.l.b16 %v1271
      %v1318 = vunpack.c.l.b16 %v1272
      %v1319 = vunpack.c.l.b16 %v1273
      %v1320 = vunpack.c.l.b16 %v1274
      %v1321 = vunpack.c.l.b16 %v1275
      %v1322 = vunpack.c.l.b16 %v1276
      %v1323 = vunpack.c.l.b16 %v1277
      %v1324 = vunpack.c.l.b16 %v1278
      %v1325 = vunpack.c.l.b16 %v1279
      %v1326 = vunpack.c.l.b16 %v1280
      %v1327 = vpack.c.b16 %v1312, %v1311
      %v1328 = vpack.c.b16 %v1314, %v1313
      %v1329 = vpack.c.b16 %v1316, %v1315
      %v1330 = vpack.c.b16 %v1318, %v1317
      %v1331 = vpack.c.b16 %v1320, %v1319
      %v1332 = vpack.c.b16 %v1322, %v1321
      %v1333 = vpack.c.b16 %v1324, %v1323
      %v1334 = vpack.c.b16 %v1326, %v1325
      %1343 = vmatprep.subr.bf16.mxu0 0
      %1344 = vmatpush1.bf16.msra.mxu0 %v1334
      %1345 = vmatprep.subr.bf16.mxu0 0
      %1346 = vmatpush1.bf16.msra.mxu0 %v1333
      %1347 = vmatprep.subr.bf16.mxu0 0
      %1348 = vmatpush1.bf16.msra.mxu0 %v1332
      %1349 = vmatprep.subr.bf16.mxu0 0
      %1350 = vmatpush1.bf16.msra.mxu0 %v1331
      %1351 = vmatprep.subr.bf16.mxu0 0
      %1352 = vmatpush1.bf16.msra.mxu0 %v1330
      %1353 = vmatprep.subr.bf16.mxu0 0
      %1354 = vmatpush1.bf16.msra.mxu0 %v1329
      %1355 = vmatprep.subr.bf16.mxu0 0
      %1356 = vmatpush1.bf16.msra.mxu0 %v1328
      %1357 = vmatprep.subr.bf16.mxu0 0
      %1358 = vmatpush1.bf16.msra.mxu0 %v1327
      %1359 = vmatprep.subr.bf16.mxu0 0
      %1360 = vmatpush2.bf16.msra.mxu0 0
      %1361 = vmatprep.subr.bf16.mxu0 0
      %1362 = vmatpush2.bf16.msra.mxu0 0
      %1363 = vmatprep.subr.bf16.mxu0 0
      %1364 = vmatpush2.bf16.msra.mxu0 0
      %1365 = vmatprep.subr.bf16.mxu0 0
      %1366 = vmatpush2.bf16.msra.mxu0 0
      %1367 = vmatprep.subr.bf16.mxu0 0
      %1368 = vmatpush2.bf16.msra.mxu0 0
      %1369 = vmatprep.subr.bf16.mxu0 0
      %1370 = vmatpush2.bf16.msra.mxu0 0
      %1371 = vmatprep.subr.bf16.mxu0 0
      %1372 = vmatpush2.bf16.msra.mxu0 0
      %1373 = vmatprep.subr.bf16.mxu0 0
      %1374 = vmatpush2.bf16.msra.mxu0 0
      %1375 = vmatprep.mubr.bf16.mxu0 0
      %1376 = vmatmul.mubr.bf16.gmra.mxu0 %v1293
      %v1377 = vpop.f32.mrf.mxu0
      %v1378 = vadd.f32 %v1287, %v1377
      %v1379 = vpop.f32.mrf.mxu0
      %v1380 = vpop.f32.mrf.mxu0
      %v1381 = vadd.f32 %v1287, %v1380
      %v1382 = vpop.f32.mrf.mxu0
      %1383 = vdwg.mxu0
      %v1384 = vmax.f32 %v1378, 0.0
      %v1385 = vmax.f32 %v1381, 0.0
      %v1386 = vadd.f32 %v1384, %v1067
      %v1387 = vadd.f32 %v1385, %v1068
      %v1388 = vmax.f32 %v1386, 0.0
      %v1389 = vmax.f32 %v1387, 0.0
      %v1392 = vrot.slane %v1388, 4
      %v1393 = vrot.slane %v1389, 4
      %v1396 = vsel %vm1075, 0.0, %v1392
      %v1397 = vsel %vm1075, 0.0, %v1393
      %1400 = vrot.lane.b32.xlu0 %v1396, 32
      %v1401 = vpop.permute.xlu0 %1400
      %1402 = vrot.lane.b32.xlu0 %v1397, 32
      %v1403 = vpop.permute.xlu0 %1402
      %1406 = vrot.lane.b32.xlu0 %v1388, 64
      %v1407 = vpop.permute.xlu0 %1406
      %1408 = vrot.lane.b32.xlu0 %v1389, 64
      %v1409 = vpop.permute.xlu0 %1408
      %v1412 = vsel %vm776, 0.0, %v1401
      %v1413 = vsel %vm776, 0.0, %v1403
      %v1414 = vsel %vm779, %v1412, %v1407
      %v1415 = vsel %vm779, %v1413, %v1409
      %v1416 = vsel %vm782, %v1414, 0.0
      %v1417 = vsel %vm782, %v1415, 0.0
      %v1418 = vpack.c.bf16 %v1416, %v1416
      %v1419 = vpack.c.bf16 %v1417, %v1417
      %s1420 = scalar_lea.vmem %s606, 256
      %v1421 = vld [vmem:[%s1420] sm:$0xf]
      %v1422 = vld [vmem:[%s1420 + $0x4] sm:$0xf]
      %v1423 = vld [vmem:[%s1420 + $0x8] sm:$0xf]
      %v1424 = vld [vmem:[%s1420 + $0xc] sm:$0xf]
      %v1425 = vld [vmem:[%s1420 + $0x10] sm:$0xf]
      %v1426 = vld [vmem:[%s1420 + $0x14] sm:$0xf]
      %v1427 = vld [vmem:[%s1420 + $0x18] sm:$0xf]
      %v1428 = vld [vmem:[%s1420 + $0x1c] sm:$0xf]
      %v1429 = vld [vmem:[%s1420 + $0x20] sm:$0xf]
      %v1430 = vld [vmem:[%s1420 + $0x24] sm:$0xf]
      %v1431 = vld [vmem:[%s1420 + $0x28] sm:$0xf]
      %v1432 = vld [vmem:[%s1420 + $0x2c] sm:$0xf]
      %v1433 = vld [vmem:[%s1420 + $0x30] sm:$0xf]
      %v1434 = vld [vmem:[%s1420 + $0x34] sm:$0xf]
      %v1435 = vld [vmem:[%s1420 + $0x38] sm:$0xf]
      %v1436 = vld [vmem:[%s1420 + $0x3c] sm:$0xf]
      %s1437 = scalar_lea.vmem %s610, 4
      %v1438 = vld [vmem:[%s1437] sm:$0x1]
      %v1440 = vlaneseq
      %v1441 = vshrl.u32 %v1440, 7
      %v1442 = vsub.s32 0, %v1441
      %v1443 = vrot.slane %v1438, %v1442
      %v1447 = vunpack.c.l.b16 %v1418
      %v1448 = vunpack.c.l.b16 %v1419
      %v1449 = vpack.c.b16 %v1448, %v1447
      %v1467 = vunpack.c.l.b16 %v1421
      %v1468 = vunpack.c.l.b16 %v1422
      %v1469 = vunpack.c.l.b16 %v1423
      %v1470 = vunpack.c.l.b16 %v1424
      %v1471 = vunpack.c.l.b16 %v1425
      %v1472 = vunpack.c.l.b16 %v1426
      %v1473 = vunpack.c.l.b16 %v1427
      %v1474 = vunpack.c.l.b16 %v1428
      %v1475 = vunpack.c.l.b16 %v1429
      %v1476 = vunpack.c.l.b16 %v1430
      %v1477 = vunpack.c.l.b16 %v1431
      %v1478 = vunpack.c.l.b16 %v1432
      %v1479 = vunpack.c.l.b16 %v1433
      %v1480 = vunpack.c.l.b16 %v1434
      %v1481 = vunpack.c.l.b16 %v1435
      %v1482 = vunpack.c.l.b16 %v1436
      %v1483 = vpack.c.b16 %v1468, %v1467
      %v1484 = vpack.c.b16 %v1470, %v1469
      %v1485 = vpack.c.b16 %v1472, %v1471
      %v1486 = vpack.c.b16 %v1474, %v1473
      %v1487 = vpack.c.b16 %v1476, %v1475
      %v1488 = vpack.c.b16 %v1478, %v1477
      %v1489 = vpack.c.b16 %v1480, %v1479
      %v1490 = vpack.c.b16 %v1482, %v1481
      %1499 = vmatprep.subr.bf16.mxu0 0
      %1500 = vmatpush1.bf16.msra.mxu0 %v1490
      %1501 = vmatprep.subr.bf16.mxu0 0
      %1502 = vmatpush1.bf16.msra.mxu0 %v1489
      %1503 = vmatprep.subr.bf16.mxu0 0
      %1504 = vmatpush1.bf16.msra.mxu0 %v1488
      %1505 = vmatprep.subr.bf16.mxu0 0
      %1506 = vmatpush1.bf16.msra.mxu0 %v1487
      %1507 = vmatprep.subr.bf16.mxu0 0
      %1508 = vmatpush1.bf16.msra.mxu0 %v1486
      %1509 = vmatprep.subr.bf16.mxu0 0
      %1510 = vmatpush1.bf16.msra.mxu0 %v1485
      %1511 = vmatprep.subr.bf16.mxu0 0
      %1512 = vmatpush1.bf16.msra.mxu0 %v1484
      %1513 = vmatprep.subr.bf16.mxu0 0
      %1514 = vmatpush1.bf16.msra.mxu0 %v1483
      %1515 = vmatprep.subr.bf16.mxu0 0
      %1516 = vmatpush2.bf16.msra.mxu0 0
      %1517 = vmatprep.subr.bf16.mxu0 0
      %1518 = vmatpush2.bf16.msra.mxu0 0
      %1519 = vmatprep.subr.bf16.mxu0 0
      %1520 = vmatpush2.bf16.msra.mxu0 0
      %1521 = vmatprep.subr.bf16.mxu0 0
      %1522 = vmatpush2.bf16.msra.mxu0 0
      %1523 = vmatprep.subr.bf16.mxu0 0
      %1524 = vmatpush2.bf16.msra.mxu0 0
      %1525 = vmatprep.subr.bf16.mxu0 0
      %1526 = vmatpush2.bf16.msra.mxu0 0
      %1527 = vmatprep.subr.bf16.mxu0 0
      %1528 = vmatpush2.bf16.msra.mxu0 0
      %1529 = vmatprep.subr.bf16.mxu0 0
      %1530 = vmatpush2.bf16.msra.mxu0 0
      %1531 = vmatprep.mubr.bf16.mxu0 0
      %1532 = vmatmul.mubr.bf16.gmra.mxu0 %v1449
      %v1533 = vpop.f32.mrf.mxu0
      %v1534 = vadd.f32 %v1443, %v1533
      %v1535 = vpop.f32.mrf.mxu0
      %v1536 = vpop.f32.mrf.mxu0
      %v1537 = vadd.f32 %v1443, %v1536
      %v1538 = vpop.f32.mrf.mxu0
      %1539 = vdwg.mxu0
      %v1540 = vmax.f32 %v1534, 0.0
      %v1541 = vmax.f32 %v1537, 0.0
      %v1544 = vrot.slane %v1540, 4
      %v1545 = vrot.slane %v1541, 4
      %v1548 = vsel %vm1075, 0.0, %v1544
      %v1549 = vsel %vm1075, 0.0, %v1545
      %1552 = vrot.lane.b32.xlu0 %v1548, 32
      %v1553 = vpop.permute.xlu0 %1552
      %1554 = vrot.lane.b32.xlu0 %v1549, 32
      %v1555 = vpop.permute.xlu0 %1554
      %1558 = vrot.lane.b32.xlu0 %v1540, 64
      %v1559 = vpop.permute.xlu0 %1558
      %1560 = vrot.lane.b32.xlu0 %v1541, 64
      %v1561 = vpop.permute.xlu0 %1560
      %v1564 = vsel %vm776, 0.0, %v1553
      %v1565 = vsel %vm776, 0.0, %v1555
      %v1566 = vsel %vm779, %v1564, %v1559
      %v1567 = vsel %vm779, %v1565, %v1561
      %v1568 = vsel %vm782, %v1566, 0.0
      %v1569 = vsel %vm782, %v1567, 0.0
      %v1570 = vpack.c.bf16 %v1568, %v1568
      %v1571 = vpack.c.bf16 %v1569, %v1569
      %s1572 = scalar_lea.vmem %s606, 320
      %v1573 = vld [vmem:[%s1572] sm:$0xf]
      %v1574 = vld [vmem:[%s1572 + $0x4] sm:$0xf]
      %v1575 = vld [vmem:[%s1572 + $0x8] sm:$0xf]
      %v1576 = vld [vmem:[%s1572 + $0xc] sm:$0xf]
      %v1577 = vld [vmem:[%s1572 + $0x10] sm:$0xf]
      %v1578 = vld [vmem:[%s1572 + $0x14] sm:$0xf]
      %v1579 = vld [vmem:[%s1572 + $0x18] sm:$0xf]
      %v1580 = vld [vmem:[%s1572 + $0x1c] sm:$0xf]
      %v1581 = vld [vmem:[%s1572 + $0x20] sm:$0xf]
      %v1582 = vld [vmem:[%s1572 + $0x24] sm:$0xf]
      %v1583 = vld [vmem:[%s1572 + $0x28] sm:$0xf]
      %v1584 = vld [vmem:[%s1572 + $0x2c] sm:$0xf]
      %v1585 = vld [vmem:[%s1572 + $0x30] sm:$0xf]
      %v1586 = vld [vmem:[%s1572 + $0x34] sm:$0xf]
      %v1587 = vld [vmem:[%s1572 + $0x38] sm:$0xf]
      %v1588 = vld [vmem:[%s1572 + $0x3c] sm:$0xf]
      %s1589 = scalar_lea.vmem %s610, 5
      %v1590 = vld [vmem:[%s1589] sm:$0x1]
      %v1592 = vlaneseq
      %v1593 = vshrl.u32 %v1592, 7
      %v1594 = vsub.s32 0, %v1593
      %v1595 = vrot.slane %v1590, %v1594
      %v1599 = vunpack.c.l.b16 %v1570
      %v1600 = vunpack.c.l.b16 %v1571
      %v1601 = vpack.c.b16 %v1600, %v1599
      %v1619 = vunpack.c.l.b16 %v1573
      %v1620 = vunpack.c.l.b16 %v1574
      %v1621 = vunpack.c.l.b16 %v1575
      %v1622 = vunpack.c.l.b16 %v1576
      %v1623 = vunpack.c.l.b16 %v1577
      %v1624 = vunpack.c.l.b16 %v1578
      %v1625 = vunpack.c.l.b16 %v1579
      %v1626 = vunpack.c.l.b16 %v1580
      %v1627 = vunpack.c.l.b16 %v1581
      %v1628 = vunpack.c.l.b16 %v1582
      %v1629 = vunpack.c.l.b16 %v1583
      %v1630 = vunpack.c.l.b16 %v1584
      %v1631 = vunpack.c.l.b16 %v1585
      %v1632 = vunpack.c.l.b16 %v1586
      %v1633 = vunpack.c.l.b16 %v1587
      %v1634 = vunpack.c.l.b16 %v1588
      %v1635 = vpack.c.b16 %v1620, %v1619
      %v1636 = vpack.c.b16 %v1622, %v1621
      %v1637 = vpack.c.b16 %v1624, %v1623
      %v1638 = vpack.c.b16 %v1626, %v1625
      %v1639 = vpack.c.b16 %v1628, %v1627
      %v1640 = vpack.c.b16 %v1630, %v1629
      %v1641 = vpack.c.b16 %v1632, %v1631
      %v1642 = vpack.c.b16 %v1634, %v1633
      %1651 = vmatprep.subr.bf16.mxu0 0
      %1652 = vmatpush1.bf16.msra.mxu0 %v1642
      %1653 = vmatprep.subr.bf16.mxu0 0
      %1654 = vmatpush1.bf16.msra.mxu0 %v1641
      %1655 = vmatprep.subr.bf16.mxu0 0
      %1656 = vmatpush1.bf16.msra.mxu0 %v1640
      %1657 = vmatprep.subr.bf16.mxu0 0
      %1658 = vmatpush1.bf16.msra.mxu0 %v1639
      %1659 = vmatprep.subr.bf16.mxu0 0
      %1660 = vmatpush1.bf16.msra.mxu0 %v1638
      %1661 = vmatprep.subr.bf16.mxu0 0
      %1662 = vmatpush1.bf16.msra.mxu0 %v1637
      %1663 = vmatprep.subr.bf16.mxu0 0
      %1664 = vmatpush1.bf16.msra.mxu0 %v1636
      %1665 = vmatprep.subr.bf16.mxu0 0
      %1666 = vmatpush1.bf16.msra.mxu0 %v1635
      %1667 = vmatprep.subr.bf16.mxu0 0
      %1668 = vmatpush2.bf16.msra.mxu0 0
      %1669 = vmatprep.subr.bf16.mxu0 0
      %1670 = vmatpush2.bf16.msra.mxu0 0
      %1671 = vmatprep.subr.bf16.mxu0 0
      %1672 = vmatpush2.bf16.msra.mxu0 0
      %1673 = vmatprep.subr.bf16.mxu0 0
      %1674 = vmatpush2.bf16.msra.mxu0 0
      %1675 = vmatprep.subr.bf16.mxu0 0
      %1676 = vmatpush2.bf16.msra.mxu0 0
      %1677 = vmatprep.subr.bf16.mxu0 0
      %1678 = vmatpush2.bf16.msra.mxu0 0
      %1679 = vmatprep.subr.bf16.mxu0 0
      %1680 = vmatpush2.bf16.msra.mxu0 0
      %1681 = vmatprep.subr.bf16.mxu0 0
      %1682 = vmatpush2.bf16.msra.mxu0 0
      %1683 = vmatprep.mubr.bf16.mxu0 0
      %1684 = vmatmul.mubr.bf16.gmra.mxu0 %v1601
      %v1685 = vpop.f32.mrf.mxu0
      %v1686 = vadd.f32 %v1595, %v1685
      %v1687 = vpop.f32.mrf.mxu0
      %v1688 = vpop.f32.mrf.mxu0
      %v1689 = vadd.f32 %v1595, %v1688
      %v1690 = vpop.f32.mrf.mxu0
      %1691 = vdwg.mxu0
      %v1692 = vmax.f32 %v1686, 0.0
      %v1693 = vmax.f32 %v1689, 0.0
      %v1694 = vadd.f32 %v1692, %v1388
      %v1695 = vadd.f32 %v1693, %v1389
      %v1696 = vmax.f32 %v1694, 0.0
      %v1697 = vmax.f32 %v1695, 0.0
      %v1698 = vpack.c.bf16 %v1697, %v1696
      %v1699 = vld [vmem:[%s615] sm:$0xf]
      %v1700 = vld [vmem:[%s615 + $0x4] sm:$0xf]
      %v1701 = vld [vmem:[%s615 + $0x8] sm:$0xf]
      %v1702 = vld [vmem:[%s615 + $0xc] sm:$0xf]
      %v1703 = vld [vmem:[%s615 + $0x10] sm:$0xf]
      %v1704 = vld [vmem:[%s615 + $0x14] sm:$0xf]
      %v1705 = vld [vmem:[%s615 + $0x18] sm:$0xf]
      %v1706 = vld [vmem:[%s615 + $0x1c] sm:$0xf]
      %v1707 = vld [vmem:[%s615 + $0x20] sm:$0xf]
      %v1708 = vld [vmem:[%s615 + $0x24] sm:$0xf]
      %v1709 = vld [vmem:[%s615 + $0x28] sm:$0xf]
      %v1710 = vld [vmem:[%s615 + $0x2c] sm:$0xf]
      %v1711 = vld [vmem:[%s615 + $0x30] sm:$0xf]
      %v1712 = vld [vmem:[%s615 + $0x34] sm:$0xf]
      %v1713 = vld [vmem:[%s615 + $0x38] sm:$0xf]
      %v1714 = vld [vmem:[%s615 + $0x3c] sm:$0xf]
      %v1715 = vld [vmem:[%s618] sm:$0x1]
      %v1717 = vlaneseq
      %v1718 = vshrl.u32 %v1717, 7
      %v1719 = vsub.s32 0, %v1718
      %v1720 = vrot.slane %v1715, %v1719
      %v1738 = vunpack.c.l.b16 %v1699
      %v1739 = vunpack.c.l.b16 %v1700
      %v1740 = vunpack.c.l.b16 %v1701
      %v1741 = vunpack.c.l.b16 %v1702
      %v1742 = vunpack.c.l.b16 %v1703
      %v1743 = vunpack.c.l.b16 %v1704
      %v1744 = vunpack.c.l.b16 %v1705
      %v1745 = vunpack.c.l.b16 %v1706
      %v1746 = vunpack.c.l.b16 %v1707
      %v1747 = vunpack.c.l.b16 %v1708
      %v1748 = vunpack.c.l.b16 %v1709
      %v1749 = vunpack.c.l.b16 %v1710
      %v1750 = vunpack.c.l.b16 %v1711
      %v1751 = vunpack.c.l.b16 %v1712
      %v1752 = vunpack.c.l.b16 %v1713
      %v1753 = vunpack.c.l.b16 %v1714
      %v1754 = vpack.c.b16 %v1739, %v1738
      %v1755 = vpack.c.b16 %v1741, %v1740
      %v1756 = vpack.c.b16 %v1743, %v1742
      %v1757 = vpack.c.b16 %v1745, %v1744
      %v1758 = vpack.c.b16 %v1747, %v1746
      %v1759 = vpack.c.b16 %v1749, %v1748
      %v1760 = vpack.c.b16 %v1751, %v1750
      %v1761 = vpack.c.b16 %v1753, %v1752
      %1770 = vmatprep.subr.bf16.mxu0 0
      %1771 = vmatpush1.bf16.msra.mxu0 %v1761
      %1772 = vmatprep.subr.bf16.mxu0 0
      %1773 = vmatpush1.bf16.msra.mxu0 %v1760
      %1774 = vmatprep.subr.bf16.mxu0 0
      %1775 = vmatpush1.bf16.msra.mxu0 %v1759
      %1776 = vmatprep.subr.bf16.mxu0 0
      %1777 = vmatpush1.bf16.msra.mxu0 %v1758
      %1778 = vmatprep.subr.bf16.mxu0 0
      %1779 = vmatpush1.bf16.msra.mxu0 %v1757
      %1780 = vmatprep.subr.bf16.mxu0 0
      %1781 = vmatpush1.bf16.msra.mxu0 %v1756
      %1782 = vmatprep.subr.bf16.mxu0 0
      %1783 = vmatpush1.bf16.msra.mxu0 %v1755
      %1784 = vmatprep.subr.bf16.mxu0 0
      %1785 = vmatpush1.bf16.msra.mxu0 %v1754
      %1786 = vmatprep.subr.bf16.mxu0 0
      %1787 = vmatpush2.bf16.msra.mxu0 0
      %1788 = vmatprep.subr.bf16.mxu0 0
      %1789 = vmatpush2.bf16.msra.mxu0 0
      %1790 = vmatprep.subr.bf16.mxu0 0
      %1791 = vmatpush2.bf16.msra.mxu0 0
      %1792 = vmatprep.subr.bf16.mxu0 0
      %1793 = vmatpush2.bf16.msra.mxu0 0
      %1794 = vmatprep.subr.bf16.mxu0 0
      %1795 = vmatpush2.bf16.msra.mxu0 0
      %1796 = vmatprep.subr.bf16.mxu0 0
      %1797 = vmatpush2.bf16.msra.mxu0 0
      %1798 = vmatprep.subr.bf16.mxu0 0
      %1799 = vmatpush2.bf16.msra.mxu0 0
      %1800 = vmatprep.subr.bf16.mxu0 0
      %1801 = vmatpush2.bf16.msra.mxu0 0
      %1802 = vmatprep.mubr.bf16.mxu0 0
      %1803 = vmatmul.mubr.bf16.gmra.mxu0 %v1698
      %v1804 = vpop.f32.mrf.mxu0
      %v1805 = vadd.f32 %v1720, %v1804
      %v1806 = vpop.f32.mrf.mxu0
      %v1807 = vpop.f32.mrf.mxu0
      %v1808 = vadd.f32 %v1720, %v1807
      %v1809 = vpop.f32.mrf.mxu0
      %1810 = vdwg.mxu0
      %1811 = vst [vmem:[%s639] sm:$0xff] %v1805
      %1812 = vst [vmem:[%s639 + $0x8] sm:$0xff] %v1808
      %s1813 = sld [smem:[#allocation3]]
      %s1814 = scalar_lea.vmem %s639, %s1813
      %v1815 = vld [vmem:[%s1814] sm:$0x1]
      %v1816 = vld [vmem:[%s1814 + $0x8] sm:$0x1]
      %v1817 = vpack.c.bf16 %v1815, %v1815
      %v1818 = vpack.c.bf16 %v1816, %v1816
      %v1819 = vld [vmem:[%s623] sm:$0xf]
      %v1820 = vld [vmem:[%s623 + $0x4] sm:$0xf]
      %v1821 = vld [vmem:[%s623 + $0x8] sm:$0xf]
      %v1822 = vld [vmem:[%s623 + $0xc] sm:$0xf]
      %v1823 = vld [vmem:[%s623 + $0x10] sm:$0xf]
      %v1824 = vld [vmem:[%s623 + $0x14] sm:$0xf]
      %v1825 = vld [vmem:[%s623 + $0x18] sm:$0xf]
      %v1826 = vld [vmem:[%s623 + $0x1c] sm:$0xf]
      %v1827 = vld [vmem:[%s623 + $0x20] sm:$0xf]
      %v1828 = vld [vmem:[%s623 + $0x24] sm:$0xf]
      %v1829 = vld [vmem:[%s623 + $0x28] sm:$0xf]
      %v1830 = vld [vmem:[%s623 + $0x2c] sm:$0xf]
      %v1831 = vld [vmem:[%s623 + $0x30] sm:$0xf]
      %v1832 = vld [vmem:[%s623 + $0x34] sm:$0xf]
      %v1833 = vld [vmem:[%s623 + $0x38] sm:$0xf]
      %v1834 = vld [vmem:[%s623 + $0x3c] sm:$0xf]
      %v1835 = vld [vmem:[%s626] sm:$0x1]
      %v1837 = vlaneseq
      %v1838 = vshrl.u32 %v1837, 7
      %v1839 = vsub.s32 0, %v1838
      %v1840 = vrot.slane %v1835, %v1839
      %v1844 = vunpack.c.l.b16 %v1817
      %v1845 = vunpack.c.l.b16 %v1818
      %v1846 = vrot.slane %v1845, 7
      %vm1847 = vcmask 1041409
      %v1848 = vsel %vm1847, %v1846, %v1844
      %v1849 = vpack.c.b16 %v1848, %v1848
      %v1867 = vunpack.c.l.b16 %v1819
      %v1868 = vunpack.c.l.b16 %v1820
      %v1869 = vunpack.c.l.b16 %v1821
      %v1870 = vunpack.c.l.b16 %v1822
      %v1871 = vunpack.c.l.b16 %v1823
      %v1872 = vunpack.c.l.b16 %v1824
      %v1873 = vunpack.c.l.b16 %v1825
      %v1874 = vunpack.c.l.b16 %v1826
      %v1875 = vunpack.c.l.b16 %v1827
      %v1876 = vunpack.c.l.b16 %v1828
      %v1877 = vunpack.c.l.b16 %v1829
      %v1878 = vunpack.c.l.b16 %v1830
      %v1879 = vunpack.c.l.b16 %v1831
      %v1880 = vunpack.c.l.b16 %v1832
      %v1881 = vunpack.c.l.b16 %v1833
      %v1882 = vunpack.c.l.b16 %v1834
      %v1883 = vpack.c.b16 %v1868, %v1867
      %v1884 = vpack.c.b16 %v1870, %v1869
      %v1885 = vpack.c.b16 %v1872, %v1871
      %v1886 = vpack.c.b16 %v1874, %v1873
      %v1887 = vpack.c.b16 %v1876, %v1875
      %v1888 = vpack.c.b16 %v1878, %v1877
      %v1889 = vpack.c.b16 %v1880, %v1879
      %v1890 = vpack.c.b16 %v1882, %v1881
      %1899 = vmatprep.subr.bf16.mxu0 0
      %1900 = vmatpush1.bf16.msra.mxu0 %v1890
      %1901 = vmatprep.subr.bf16.mxu0 0
      %1902 = vmatpush1.bf16.msra.mxu0 %v1889
      %1903 = vmatprep.subr.bf16.mxu0 0
      %1904 = vmatpush1.bf16.msra.mxu0 %v1888
      %1905 = vmatprep.subr.bf16.mxu0 0
      %1906 = vmatpush1.bf16.msra.mxu0 %v1887
      %1907 = vmatprep.subr.bf16.mxu0 0
      %1908 = vmatpush1.bf16.msra.mxu0 %v1886
      %1909 = vmatprep.subr.bf16.mxu0 0
      %1910 = vmatpush1.bf16.msra.mxu0 %v1885
      %1911 = vmatprep.subr.bf16.mxu0 0
      %1912 = vmatpush1.bf16.msra.mxu0 %v1884
      %1913 = vmatprep.subr.bf16.mxu0 0
      %1914 = vmatpush1.bf16.msra.mxu0 %v1883
      %1915 = vmatprep.subr.bf16.mxu0 0
      %1916 = vmatpush2.bf16.msra.mxu0 0
      %1917 = vmatprep.subr.bf16.mxu0 0
      %1918 = vmatpush2.bf16.msra.mxu0 0
      %1919 = vmatprep.subr.bf16.mxu0 0
      %1920 = vmatpush2.bf16.msra.mxu0 0
      %1921 = vmatprep.subr.bf16.mxu0 0
      %1922 = vmatpush2.bf16.msra.mxu0 0
      %1923 = vmatprep.subr.bf16.mxu0 0
      %1924 = vmatpush2.bf16.msra.mxu0 0
      %1925 = vmatprep.subr.bf16.mxu0 0
      %1926 = vmatpush2.bf16.msra.mxu0 0
      %1927 = vmatprep.subr.bf16.mxu0 0
      %1928 = vmatpush2.bf16.msra.mxu0 0
      %1929 = vmatprep.subr.bf16.mxu0 0
      %1930 = vmatpush2.bf16.msra.mxu0 0
      %1931 = vmatprep.mubr.bf16.mxu0 0
      %1932 = vmatmul.mubr.bf16.gmra.mxu0 %v1849
      %v1933 = vpop.f32.mrf.mxu0
      %v1934 = vadd.f32 %v1840, %v1933
      %v1935 = vpop.f32.mrf.mxu0
      %v1936 = vpop.f32.mrf.mxu0
      %v1937 = vpop.f32.mrf.mxu0
      %1938 = vdwg.mxu0
      %v1939 = vmax.f32 %v1934, 0.0
      %v1940 = vpack.c.bf16 %v1939, %v1939
      %v1941 = vld [vmem:[%s631] sm:$0xf]
      %v1942 = vld [vmem:[%s631 + $0x4] sm:$0xf]
      %v1943 = vld [vmem:[%s631 + $0x8] sm:$0xf]
      %v1944 = vld [vmem:[%s631 + $0xc] sm:$0xf]
      %v1945 = vld [vmem:[%s631 + $0x10] sm:$0xf]
      %v1946 = vld [vmem:[%s631 + $0x14] sm:$0xf]
      %v1947 = vld [vmem:[%s631 + $0x18] sm:$0xf]
      %v1948 = vld [vmem:[%s631 + $0x1c] sm:$0xf]
      %v1949 = vld [vmem:[%s631 + $0x20] sm:$0xf]
      %v1950 = vld [vmem:[%s631 + $0x24] sm:$0xf]
      %v1951 = vld [vmem:[%s631 + $0x28] sm:$0xf]
      %v1952 = vld [vmem:[%s631 + $0x2c] sm:$0xf]
      %v1953 = vld [vmem:[%s631 + $0x30] sm:$0xf]
      %v1954 = vld [vmem:[%s631 + $0x34] sm:$0xf]
      %v1955 = vld [vmem:[%s631 + $0x38] sm:$0xf]
      %v1956 = vld [vmem:[%s631 + $0x3c] sm:$0xf]
      %v1957 = vld [vmem:[%s634] sm:$0x1]
      %v1959 = vlaneseq
      %v1960 = vshrl.u32 %v1959, 7
      %v1961 = vsub.s32 0, %v1960
      %v1962 = vrot.slane %v1957, %v1961
      %v1980 = vunpack.c.l.b16 %v1941
      %v1981 = vunpack.c.l.b16 %v1942
      %v1982 = vunpack.c.l.b16 %v1943
      %v1983 = vunpack.c.l.b16 %v1944
      %v1984 = vunpack.c.l.b16 %v1945
      %v1985 = vunpack.c.l.b16 %v1946
      %v1986 = vunpack.c.l.b16 %v1947
      %v1987 = vunpack.c.l.b16 %v1948
      %v1988 = vunpack.c.l.b16 %v1949
      %v1989 = vunpack.c.l.b16 %v1950
      %v1990 = vunpack.c.l.b16 %v1951
      %v1991 = vunpack.c.l.b16 %v1952
      %v1992 = vunpack.c.l.b16 %v1953
      %v1993 = vunpack.c.l.b16 %v1954
      %v1994 = vunpack.c.l.b16 %v1955
      %v1995 = vunpack.c.l.b16 %v1956
      %v1996 = vpack.c.b16 %v1981, %v1980
      %v1997 = vpack.c.b16 %v1983, %v1982
      %v1998 = vpack.c.b16 %v1985, %v1984
      %v1999 = vpack.c.b16 %v1987, %v1986
      %v2000 = vpack.c.b16 %v1989, %v1988
      %v2001 = vpack.c.b16 %v1991, %v1990
      %v2002 = vpack.c.b16 %v1993, %v1992
      %v2003 = vpack.c.b16 %v1995, %v1994
      %2012 = vmatprep.subr.bf16.mxu0 0
      %2013 = vmatpush1.bf16.msra.mxu0 %v2003
      %2014 = vmatprep.subr.bf16.mxu0 0
      %2015 = vmatpush1.bf16.msra.mxu0 %v2002
      %2016 = vmatprep.subr.bf16.mxu0 0
      %2017 = vmatpush1.bf16.msra.mxu0 %v2001
      %2018 = vmatprep.subr.bf16.mxu0 0
      %2019 = vmatpush1.bf16.msra.mxu0 %v2000
      %2020 = vmatprep.subr.bf16.mxu0 0
      %2021 = vmatpush1.bf16.msra.mxu0 %v1999
      %2022 = vmatprep.subr.bf16.mxu0 0
      %2023 = vmatpush1.bf16.msra.mxu0 %v1998
      %2024 = vmatprep.subr.bf16.mxu0 0
      %2025 = vmatpush1.bf16.msra.mxu0 %v1997
      %2026 = vmatprep.subr.bf16.mxu0 0
      %2027 = vmatpush1.bf16.msra.mxu0 %v1996
      %2028 = vmatprep.subr.bf16.mxu0 0
      %2029 = vmatpush2.bf16.msra.mxu0 0
      %2030 = vmatprep.subr.bf16.mxu0 0
      %2031 = vmatpush2.bf16.msra.mxu0 0
      %2032 = vmatprep.subr.bf16.mxu0 0
      %2033 = vmatpush2.bf16.msra.mxu0 0
      %2034 = vmatprep.subr.bf16.mxu0 0
      %2035 = vmatpush2.bf16.msra.mxu0 0
      %2036 = vmatprep.subr.bf16.mxu0 0
      %2037 = vmatpush2.bf16.msra.mxu0 0
      %2038 = vmatprep.subr.bf16.mxu0 0
      %2039 = vmatpush2.bf16.msra.mxu0 0
      %2040 = vmatprep.subr.bf16.mxu0 0
      %2041 = vmatpush2.bf16.msra.mxu0 0
      %2042 = vmatprep.subr.bf16.mxu0 0
      %2043 = vmatpush2.bf16.msra.mxu0 0
      %2044 = vmatprep.mubr.bf16.mxu0 0
      %2045 = vmatmul.mubr.bf16.gmra.mxu0 %v1940
      %v2046 = vpop.f32.mrf.mxu0
      %v2047 = vadd.f32 %v1962, %v2046
      %v2048 = vpop.f32.mrf.mxu0
      %v2049 = vpop.f32.mrf.mxu0
      %v2050 = vpop.f32.mrf.mxu0
      %2051 = vdwg.mxu0
      %2052 = vst [vmem:[%s643] sm:$0x3] %v2047
      %p2053 = scmp.lt.s32.totalorder %s27, 1
      %s2054 = scalar_select %p2053, %s27, 1
      %s2055 = smul.addr %s2054, 2
      %s2056 = smul.addr %s2055, 8
      %s2057 = scalar_lea.vmem %s13, %s2056
      %p2058 = scmp.lt.s32.totalorder %s27, 1
      %s2059 = scalar_select %p2058, %s27, 1
      %s2060 = smul.addr %s2059, 2
      %s2061 = scalar_lea.vmem %s14, %s2060
      // Predicated region
      $region69: #{tcn_moco_pretrain_forward.1} parent=67 // pred_check
        %p2062 = pneg %p357
      $region70: #{tcn_moco_pretrain_forward.1} parent=67 // pred_check_branch
        %2064 = sbr.rel (%p2062) target = $region72
      $region71: #{tcn_moco_pretrain_forward.1} parent=67 // pred_region
        _
      $region72: #{tcn_moco_pretrain_forward.1} parent=67 // pred_fallthru
        _
      // Predicated region
      $region73: #{tcn_moco_pretrain_forward.1} parent=67 // pred_check
        %p2065 = pneg %p383
      $region74: #{tcn_moco_pretrain_forward.1} parent=67 // pred_check_branch
        %2067 = sbr.rel (%p2065) target = $region76
      $region75: #{tcn_moco_pretrain_forward.1} parent=67 // pred_region
        _
      $region76: #{tcn_moco_pretrain_forward.1} parent=67 // pred_fallthru
        _
    $region68: #{tcn_moco_pretrain_forward.1} parent=5 // pred_fallthru
      _
    %p2068 = scmp.le.s32.totalorder 2, %s22
    // Predicated region
    $region77: #{tcn_moco_pretrain_forward.1} parent=5 // pred_check
      %p2069 = pneg %p2068
    $region78: #{tcn_moco_pretrain_forward.1} parent=5 // pred_check_branch
      %2071 = sbr.rel (%p2069) target = $region80
    $region79: #{tcn_moco_pretrain_forward.1} parent=5 // pred_region
      %s2072 = ssub.s32 %s22, 2
      // Predicated region
      $region81: #{tcn_moco_pretrain_forward.1} parent=79 // pred_check
        %p2073 = pneg %p363
      $region82: #{tcn_moco_pretrain_forward.1} parent=79 // pred_check_branch
        %2075 = sbr.rel (%p2073) target = $region84
      $region83: #{tcn_moco_pretrain_forward.1} parent=79 // pred_region
        %p2076 = scmp.lt.s32.totalorder %s28, 1
        %s2077 = scalar_select %p2076, %s28, 1
        %s2078 = smul.addr %s2077, 2
        %s2079 = smul.addr %s2078, 8
        %s2080 = scalar_lea.vmem %s13, %s2079
      $region84: #{tcn_moco_pretrain_forward.1} parent=79 // pred_fallthru
        _
      // Predicated region
      $region85: #{tcn_moco_pretrain_forward.1} parent=79 // pred_check
        %p2081 = pneg %p389
      $region86: #{tcn_moco_pretrain_forward.1} parent=79 // pred_check_branch
        %2083 = sbr.rel (%p2081) target = $region88
      $region87: #{tcn_moco_pretrain_forward.1} parent=79 // pred_region
        %p2084 = scmp.lt.s32.totalorder %s28, 1
        %s2085 = scalar_select %p2084, %s28, 1
        %s2086 = smul.addr %s2085, 2
        %s2087 = scalar_lea.vmem %s14, %s2086
      $region88: #{tcn_moco_pretrain_forward.1} parent=79 // pred_fallthru
        _
    $region80: #{tcn_moco_pretrain_forward.1} parent=5 // pred_fallthru
      _
  $region6: #{tcn_moco_pretrain_forward.1} parent=0 // loop_footer
    %s26 = sadd.s32 1, %s22
  $region7: #{tcn_moco_pretrain_forward.1} parent=0 // loop_footer_branch
    %21 = sbr.rel target = $region3
  $region8: #{tcn_moco_pretrain_forward.1} parent=0 // loop_exit
    _

</llo_original>
